<compile_context>
chip_gen: v6e
topology: v6e:2x2x1
jax: 0.10.0
libtpu: 0.0.40
codegen_flags: <defaults>
</compile_context>

<pallas_src>
import functools

import jax
import jax.numpy as jnp
from jax.experimental import pallas as pl
from jax.experimental.pallas import tpu as pltpu

LN_EPS = 1e-5     # PyTorch nn.LayerNorm default
OUT_PAD = 128     # lane-dense output width (wrapper slices back to output_dim)


def _layernorm(x, gamma, beta):
    mu = jnp.mean(x, axis=-1, keepdims=True)
    var = jnp.mean((x - mu) ** 2, axis=-1, keepdims=True)
    return (x - mu) * jax.lax.rsqrt(var + LN_EPS) * gamma + beta


def actor_kernel(dims, layout, self_ref, nodes_ref, p_ref, out_ref):
    """EntitySelfAttention.calculate_actions for one batch tile (pure 2D ops)."""
    F, E, H, N, S = dims['F'], dims['E'], dims['H'], dims['N'], dims['S']
    Dh = E // H
    TB = self_ref.shape[0]

    def param(name):
        r0, nr, nc = layout[name]                  # static Python ints
        return p_ref[r0:r0 + nr, 0:nc]

    fdot = functools.partial(jnp.dot, preferred_element_type=jnp.float32)

    # ---- unpack parameters (static sublane slices of the single slab) ----
    w_se, b_se, g_se, be_se = param('w_se'), param('b_se'), param('g_se'), param('be_se')
    w_ne_node, w_ne_self = param('w_ne_node'), param('w_ne_self')
    b_ne, g_ne, be_ne = param('b_ne'), param('g_ne'), param('be_ne')
    w_qk, b_qk = param('w_qk'), param('b_qk')       # (E, 2E) [q*scale | k], (1, 2E)
    w_vo = param('w_vo')                            # (E, H*E)  per-head Wv_h @ Wo_h
    b_attn = param('b_attn')                        # (1, E)    sum_h bv_h@Wo_h + bo
    w_mlp, b_mlp = param('w_mlp'), param('b_mlp')
    g_rsa, be_rsa = param('g_rsa'), param('be_rsa')
    w_dec_self, w_dec_pool, b_dec = param('w_dec_self'), param('w_dec_pool'), param('b_dec')
    assign = param('assign')                        # (TB*N, TB)   row b*N+j -> batch b
    scat_self = param('scat_self')                  # (TB*S, TB)   emb row b*S     <- se[b]
    scat_node = param('scat_node')                  # (TB*S, TB*N) emb row b*S+1+j <- ne[b*N+j]
    pool_mat = param('pool')                        # (TB, TB*S)   1/S within batch block
    blockmask = param('blockmask')                  # (TB*S, TB*S) block-diagonal 0/1

    self_x = self_ref[...]                          # (TB, F)
    nodes_x = nodes_ref[...]                        # (TB*N, F)  batch-major flat

    # ---- self embedding: Linear -> LayerNorm -> tanh ----
    se = jnp.tanh(_layernorm(fdot(self_x, w_se) + b_se, g_se, be_se))        # (TB, E)

    # ---- node embedding: flat 2D matmuls; per-batch se part via assign matmul ----
    ne = fdot(nodes_x, w_ne_node) + fdot(assign, fdot(se, w_ne_self)) + b_ne
    ne = jnp.tanh(_layernorm(ne, g_ne, be_ne))                               # (TB*N, E)

    # ---- assemble token sequence (TB*S, E) with scatter matmuls (no concat) ----
    emb = fdot(scat_self, se) + fdot(scat_node, ne)                          # (TB*S, E)

    # ---- ResidualSA: MHA with fused Q/K projection and per-head folded V*O ----
    qk = fdot(emb, w_qk) + b_qk                                              # (TB*S, 2E)
    vo = fdot(emb, w_vo)                                                     # (TB*S, H*E)

    attn = jnp.zeros((TB * S, E), jnp.float32)
    for h in range(H):                               # static, H small
        qh = qk[:, h * Dh:(h + 1) * Dh]              # (TB*S, Dh), scale pre-folded
        kh = qk[:, E + h * Dh:E + (h + 1) * Dh]      # (TB*S, Dh)
        s = jnp.einsum('qd,kd->qk', qh, kh,
                       preferred_element_type=jnp.float32)                   # (TB*S, TB*S)
        m = jnp.max(s, axis=-1, keepdims=True)
        e = jnp.exp(s - m) * blockmask               # per-batch softmax via 0/1 mask
        p = e * pl.reciprocal(jnp.sum(e, axis=-1, keepdims=True), approx=True)
        voh = vo[:, h * E:(h + 1) * E]               # (TB*S, E) = V_h already through Wo_h
        attn = attn + fdot(p, voh)
    attn = attn + b_attn                                                     # (TB*S, E)

    # ---- ResidualSA MLP (num_mlps=1): x = emb + tanh(Linear(attn)) ----
    x = emb + jnp.tanh(fdot(attn, w_mlp) + b_mlp)

    # ---- final LayerNorm, mean-pool over entities (self token included) ----
    x = _layernorm(x, g_rsa, be_rsa)                                         # (TB*S, E)
    pool_v = fdot(pool_mat, x)                                               # (TB, E)

    # ---- decider (split matmul, output lane-padded to 128) ----
    dec = fdot(se, w_dec_self) + fdot(pool_v, w_dec_pool) + b_dec            # (TB, OUT_PAD)
    out_ref[...] = jnp.tanh(dec)


def init_actor_params(key, num_features, embed_dim, output_dim):
    """Deterministic synthetic parameters matching EntitySelfAttention shapes."""
    ks = jax.random.split(key, 12)
    w = lambda k, shape: 0.1 * jax.random.normal(k, shape, dtype=jnp.float32)
    E, F, O = embed_dim, num_features, output_dim
    return {
        'w_se': w(ks[0], (F, E)), 'b_se': w(ks[1], (1, E)),
        'g_se': jnp.ones((1, E), jnp.float32), 'be_se': jnp.zeros((1, E), jnp.float32),
        'w_ne': w(ks[2], (E + F, E)), 'b_ne': w(ks[3], (1, E)),
        'g_ne': jnp.ones((1, E), jnp.float32), 'be_ne': jnp.zeros((1, E), jnp.float32),
        'wq': w(ks[4], (E, E)), 'wk': w(ks[5], (E, E)), 'wv': w(ks[6], (E, E)),
        'bq': jnp.zeros((1, E), jnp.float32), 'bk': jnp.zeros((1, E), jnp.float32),
        'bv': jnp.zeros((1, E), jnp.float32),
        'wo': w(ks[7], (E, E)), 'bo': w(ks[8], (1, E)),
        'w_mlp': w(ks[9], (E, E)), 'b_mlp': w(ks[10], (1, E)),
        'g_rsa': jnp.ones((1, E), jnp.float32), 'be_rsa': jnp.zeros((1, E), jnp.float32),
        'w_dec': w(ks[11], (2 * E, O)), 'b_dec': jnp.zeros((1, O), jnp.float32),
    }


def pack_actor_params(params, *, num_heads, num_nodes, batch_tile):
    """One-time packing of all parameters + structural matrices into a single
    lane-128 slab (call once at init / policy update, NOT per forward)."""
    f32 = jnp.float32
    E = params['wq'].shape[0]
    F = params['w_se'].shape[0]
    O = params['w_dec'].shape[1]
    H, N, TB = num_heads, num_nodes, batch_tile
    S = N + 1
    Dh = E // H
    scale = 1.0 / (Dh ** 0.5)

    def pad_lanes(a, width):
        return jnp.pad(a, ((0, 0), (0, width - a.shape[1])))

    # fused / folded weights
    w_qk = jnp.concatenate([params['wq'] * scale, params['wk']], axis=1)      # (E, 2E)
    b_qk = jnp.concatenate([params['bq'] * scale, params['bk']], axis=1)      # (1, 2E)
    wo = params['wo']
    w_vo = jnp.concatenate(
        [params['wv'][:, h * Dh:(h + 1) * Dh] @ wo[h * Dh:(h + 1) * Dh, :]
         for h in range(H)], axis=1)                                          # (E, H*E)
    b_attn = sum(params['bv'][:, h * Dh:(h + 1) * Dh] @ wo[h * Dh:(h + 1) * Dh, :]
                 for h in range(H)) + params['bo']                            # (1, E)

    # structural 0/1 matrices (exact; let the MXU do scatter/broadcast/pool)
    eyeTB = jnp.eye(TB, dtype=f32)
    assign = jnp.repeat(eyeTB, N, axis=0)                                     # (TB*N, TB)
    scat_self = jnp.zeros((TB * S, TB), f32).at[
        jnp.arange(TB) * S, jnp.arange(TB)].set(1.0)                          # (TB*S, TB)
    node_rows = (jnp.arange(TB * N) // N) * S + 1 + (jnp.arange(TB * N) % N)
    scat_node = jnp.zeros((TB * S, TB * N), f32).at[
        node_rows, jnp.arange(TB * N)].set(1.0)                               # (TB*S, TB*N)
    pool = jnp.repeat(eyeTB, S, axis=1) / float(S)                            # (TB, TB*S)
    blockmask = jnp.repeat(jnp.repeat(eyeTB, S, axis=0), S, axis=1)           # (TB*S, TB*S)

    sections = [
        ('w_se', params['w_se']),
        ('w_ne_node', params['w_ne'][E:, :]),
        ('w_ne_self', params['w_ne'][:E, :]),
        ('w_qk', w_qk), ('w_vo', w_vo), ('w_mlp', params['w_mlp']),
        ('w_dec_self', pad_lanes(params['w_dec'][:E, :], OUT_PAD)),
        ('w_dec_pool', pad_lanes(params['w_dec'][E:, :], OUT_PAD)),
        ('b_se', params['b_se']), ('g_se', params['g_se']), ('be_se', params['be_se']),
        ('b_ne', params['b_ne']), ('g_ne', params['g_ne']), ('be_ne', params['be_ne']),
        ('b_qk', b_qk), ('b_attn', b_attn), ('b_mlp', params['b_mlp']),
        ('g_rsa', params['g_rsa']), ('be_rsa', params['be_rsa']),
        ('b_dec', pad_lanes(params['b_dec'], OUT_PAD)),
        ('assign', assign), ('scat_self', scat_self), ('scat_node', scat_node),
        ('pool', pool), ('blockmask', blockmask),
    ]

    layout, rows, off = {}, [], 0
    for name, a in sections:
        a = a.astype(f32)
        r, c = a.shape
        layout[name] = (off, r, c)
        a = pad_lanes(a, 128)
        pad_r = (-r) % 8                     # keep every section sublane-tile aligned
        if pad_r:
            a = jnp.pad(a, ((0, pad_r), (0, 0)))
        rows.append(a)
        off += r + pad_r
    slab = jnp.concatenate(rows, axis=0)     # (R, 128), R multiple of 8

    dims = dict(F=F, E=E, O=O, H=H, N=N, S=S, TB=TB)
    return dict(slab=slab, layout=layout, dims=dims)


def ppo_forward(packed, self_entity, node_entities, *, action_std, sample_key):
    """PPO.forward: actions = actor.calculate_actions(state); action ~ N(actions, std^2 I)."""
    dims = packed['dims']
    B, F = self_entity.shape
    N = node_entities.shape[1]
    assert F == dims['F'] and N == dims['N']
    TB, O = dims['TB'], dims['O']
    assert B % TB == 0, "batch must be a multiple of the packed batch tile"

    nodes_flat = node_entities.reshape(B * N, F)       # batch-major flatten (free)
    slab = packed['slab']

    # Tiny problem per tile -> everything stays resident in VMEM; with large
    # rollout batches the ("parallel",) batch grid shards tiles across
    # TensorCores (v7x megacore). Size TB against v7x's 64 MiB VMEM / v5e's
    # 16 MiB default scoped limit if you grow it.
    out_pad = pl.pallas_call(
        functools.partial(actor_kernel, dims, packed['layout']),
        out_shape=jax.ShapeDtypeStruct((B, OUT_PAD), jnp.float32),
        grid=(B // TB,),
        in_specs=[
            pl.BlockSpec((TB, F), lambda i: (i, 0)),
            pl.BlockSpec((TB * N, F), lambda i: (i, 0)),
            pl.BlockSpec(slab.shape, lambda i: (0, 0)),   # params resident across tiles
        ],
        out_specs=pl.BlockSpec((TB, OUT_PAD), lambda i: (i, 0)),
        compiler_params=pltpu.CompilerParams(dimension_semantics=("parallel",)),
    )(self_entity, nodes_flat, slab)

    actions = out_pad[:, :O]                             # drop lane padding
    # MultivariateNormal(actions, diag(std^2)).sample() == actions + std * N(0, I)
    eps = jax.random.normal(sample_key, actions.shape, dtype=actions.dtype)
    return actions + action_std * eps, actions


def actor_reference(params, self_entity, node_entities, num_heads):
    """Pure-JAX reference of EntitySelfAttention.calculate_actions (validation)."""
    E = params['wq'].shape[0]
    H = num_heads
    Dh = E // H
    B, N, _ = node_entities.shape
    se = jnp.tanh(_layernorm(self_entity @ params['w_se'] + params['b_se'],
                             params['g_se'], params['be_se']))
    cat = jnp.concatenate(
        [jnp.broadcast_to(se[:, None, :], (B, N, E)), node_entities], axis=-1)
    ne = jnp.tanh(_layernorm(cat @ params['w_ne'] + params['b_ne'],
                             params['g_ne'], params['be_ne']))
    emb = jnp.concatenate([se[:, None, :], ne], axis=1)
    q = emb @ params['wq'] + params['bq']
    k = emb @ params['wk'] + params['bk']
    v = emb @ params['wv'] + params['bv']
    scale = 1.0 / (Dh ** 0.5)
    outs = []
    for h in range(H):
        sl = slice(h * Dh, (h + 1) * Dh)
        s = jnp.einsum('bqd,bkd->bqk', q[..., sl] * scale, k[..., sl])
        p = jax.nn.softmax(s, axis=-1)
        outs.append(jnp.einsum('bqk,bkd->bqd', p, v[..., sl]))
    attn = jnp.concatenate(outs, axis=-1) @ params['wo'] + params['bo']
    x = emb + jnp.tanh(attn @ params['w_mlp'] + params['b_mlp'])
    x = _layernorm(x, params['g_rsa'], params['be_rsa'])
    pool = x.mean(axis=1)
    dec = jnp.concatenate([se, pool], axis=-1) @ params['w_dec'] + params['b_dec']
    return jnp.tanh(dec)


if __name__ == "__main__":
    # Small shapes consistent with the module's forward:
    B = 2            # batch
    F = 8            # num_features_per_node
    N = 7            # node entities -> sequence length S = N+1 = 8
    E = 32           # embed_dim
    H = 4            # num_heads
    OUT = 4          # output_dim (action dim)
    ACTION_STD = 0.6

    root = jax.random.PRNGKey(0)
    k_param, k_self, k_nodes, k_sample = jax.random.split(root, 4)

    params = init_actor_params(k_param, F, E, OUT)
    self_entity = jax.random.normal(k_self, (B, F), dtype=jnp.float32)
    node_entities = jax.random.normal(k_nodes, (B, N, F), dtype=jnp.float32)

    # Pack parameters ONCE (outside the rollout / per-call path).
    TB = B if B <= 8 else 8
    packed = pack_actor_params(params, num_heads=H, num_nodes=N, batch_tile=TB)

    action, actions_mean = ppo_forward(
        packed, self_entity, node_entities,
        action_std=ACTION_STD, sample_key=k_sample)
    jax.block_until_ready(action)
    jax.block_until_ready(actions_mean)

    assert action.shape == (B, OUT) and actions_mean.shape == (B, OUT)
    assert bool(jnp.all(jnp.isfinite(action)))
    # actor output passes through tanh, so the mean must lie in [-1, 1]
    assert bool(jnp.all(jnp.abs(actions_mean) <= 1.0 + 1e-6))

    # Validate against a pure-JAX reference of the PyTorch forward
    # (loose tolerance: approx reciprocal in softmax + folded Wv@Wo / bias).
    ref = actor_reference(params, self_entity, node_entities, H)
    max_err = float(jnp.max(jnp.abs(actions_mean - ref)))
    assert max_err < 5e-2, f"kernel vs reference mismatch: {max_err}"

    # TODO(synk): PPO.update() (Adam optimizer, clipping loss, MemoryBuffer reward
    # propagation) is host-side training logic, not forward compute.
    print("KERNEL_OK")
</pallas_src>

<mosaic_0001>
module attributes {stable_mosaic.version = 11 : i64} {
  func.func @actor_kernel(%arg0: i32, %arg1: memref<2x8xf32, #tpu.memory_space<vmem>>, %arg2: memref<14x8xf32, #tpu.memory_space<vmem>>, %arg3: memref<376x128xf32, #tpu.memory_space<vmem>>, %arg4: memref<2x128xf32, #tpu.memory_space<vmem>>) attributes {dimension_semantics = [#tpu.dimension_semantics<parallel>], iteration_bounds = array<i64: 1>, scalar_prefetch = 0 : i64, scratch_operands = 0 : i64, tpu.core_type = #tpu.core_type<tc>, window_params = [{transform_indices = @transform_0, window_bounds = array<i64: 2, 8>}, {transform_indices = @transform_1, window_bounds = array<i64: 14, 8>}, {pipeline_mode = #tpu.pipeline_mode<synchronous>, transform_indices = @transform_2, window_bounds = array<i64: 376, 128>}, {transform_indices = @transform_3, window_bounds = array<i64: 2, 128>}]} {
    %c0 = arith.constant 0 : index
    %c0_0 = arith.constant 0 : index
    %0 = vector.load %arg3[%c0, %c0_0] : memref<376x128xf32, #tpu.memory_space<vmem>>, vector<8x32xf32>
    %c208 = arith.constant 208 : index
    %c0_1 = arith.constant 0 : index
    %1 = vector.load %arg3[%c208, %c0_1] : memref<376x128xf32, #tpu.memory_space<vmem>>, vector<1x32xf32>
    %c216 = arith.constant 216 : index
    %c0_2 = arith.constant 0 : index
    %2 = vector.load %arg3[%c216, %c0_2] : memref<376x128xf32, #tpu.memory_space<vmem>>, vector<1x32xf32>
    %c224 = arith.constant 224 : index
    %c0_3 = arith.constant 0 : index
    %3 = vector.load %arg3[%c224, %c0_3] : memref<376x128xf32, #tpu.memory_space<vmem>>, vector<1x32xf32>
    %c8 = arith.constant 8 : index
    %c0_4 = arith.constant 0 : index
    %4 = vector.load %arg3[%c8, %c0_4] : memref<376x128xf32, #tpu.memory_space<vmem>>, vector<8x32xf32>
    %c16 = arith.constant 16 : index
    %c0_5 = arith.constant 0 : index
    %5 = vector.load %arg3[%c16, %c0_5] : memref<376x128xf32, #tpu.memory_space<vmem>>, vector<32x32xf32>
    %c232 = arith.constant 232 : index
    %c0_6 = arith.constant 0 : index
    %6 = vector.load %arg3[%c232, %c0_6] : memref<376x128xf32, #tpu.memory_space<vmem>>, vector<1x32xf32>
    %c240 = arith.constant 240 : index
    %c0_7 = arith.constant 0 : index
    %7 = vector.load %arg3[%c240, %c0_7] : memref<376x128xf32, #tpu.memory_space<vmem>>, vector<1x32xf32>
    %c248 = arith.constant 248 : index
    %c0_8 = arith.constant 0 : index
    %8 = vector.load %arg3[%c248, %c0_8] : memref<376x128xf32, #tpu.memory_space<vmem>>, vector<1x32xf32>
    %c48 = arith.constant 48 : index
    %c0_9 = arith.constant 0 : index
    %9 = vector.load %arg3[%c48, %c0_9] : memref<376x128xf32, #tpu.memory_space<vmem>>, vector<32x64xf32>
    %c256 = arith.constant 256 : index
    %c0_10 = arith.constant 0 : index
    %10 = vector.load %arg3[%c256, %c0_10] : memref<376x128xf32, #tpu.memory_space<vmem>>, vector<1x64xf32>
    %c80 = arith.constant 80 : index
    %c0_11 = arith.constant 0 : index
    %11 = vector.load %arg3[%c80, %c0_11] : memref<376x128xf32, #tpu.memory_space<vmem>>, vector<32x128xf32>
    %c264 = arith.constant 264 : index
    %c0_12 = arith.constant 0 : index
    %12 = vector.load %arg3[%c264, %c0_12] : memref<376x128xf32, #tpu.memory_space<vmem>>, vector<1x32xf32>
    %c112 = arith.constant 112 : index
    %c0_13 = arith.constant 0 : index
    %13 = vector.load %arg3[%c112, %c0_13] : memref<376x128xf32, #tpu.memory_space<vmem>>, vector<32x32xf32>
    %c272 = arith.constant 272 : index
    %c0_14 = arith.constant 0 : index
    %14 = vector.load %arg3[%c272, %c0_14] : memref<376x128xf32, #tpu.memory_space<vmem>>, vector<1x32xf32>
    %c280 = arith.constant 280 : index
    %c0_15 = arith.constant 0 : index
    %15 = vector.load %arg3[%c280, %c0_15] : memref<376x128xf32, #tpu.memory_space<vmem>>, vector<1x32xf32>
    %c288 = arith.constant 288 : index
    %c0_16 = arith.constant 0 : index
    %16 = vector.load %arg3[%c288, %c0_16] : memref<376x128xf32, #tpu.memory_space<vmem>>, vector<1x32xf32>
    %c144 = arith.constant 144 : index
    %c0_17 = arith.constant 0 : index
    %17 = vector.load %arg3[%c144, %c0_17] : memref<376x128xf32, #tpu.memory_space<vmem>>, vector<32x128xf32>
    %c176 = arith.constant 176 : index
    %c0_18 = arith.constant 0 : index
    %18 = vector.load %arg3[%c176, %c0_18] : memref<376x128xf32, #tpu.memory_space<vmem>>, vector<32x128xf32>
    %c296 = arith.constant 296 : index
    %c0_19 = arith.constant 0 : index
    %19 = vector.load %arg3[%c296, %c0_19] : memref<376x128xf32, #tpu.memory_space<vmem>>, vector<1x128xf32>
    %c304 = arith.constant 304 : index
    %c0_20 = arith.constant 0 : index
    %20 = vector.load %arg3[%c304, %c0_20] : memref<376x128xf32, #tpu.memory_space<vmem>>, vector<14x2xf32>
    %c320 = arith.constant 320 : index
    %c0_21 = arith.constant 0 : index
    %21 = vector.load %arg3[%c320, %c0_21] : memref<376x128xf32, #tpu.memory_space<vmem>>, vector<16x2xf32>
    %c336 = arith.constant 336 : index
    %c0_22 = arith.constant 0 : index
    %22 = vector.load %arg3[%c336, %c0_22] : memref<376x128xf32, #tpu.memory_space<vmem>>, vector<16x14xf32>
    %c352 = arith.constant 352 : index
    %c0_23 = arith.constant 0 : index
    %23 = vector.load %arg3[%c352, %c0_23] : memref<376x128xf32, #tpu.memory_space<vmem>>, vector<2x16xf32>
    %c360 = arith.constant 360 : index
    %c0_24 = arith.constant 0 : index
    %24 = vector.load %arg3[%c360, %c0_24] : memref<376x128xf32, #tpu.memory_space<vmem>>, vector<16x16xf32>
    %c0_25 = arith.constant 0 : index
    %c0_26 = arith.constant 0 : index
    %25 = vector.load %arg1[%c0_25, %c0_26] : memref<2x8xf32, #tpu.memory_space<vmem>>, vector<2x8xf32>
    %c0_27 = arith.constant 0 : index
    %c0_28 = arith.constant 0 : index
    %26 = vector.load %arg2[%c0_27, %c0_28] : memref<14x8xf32, #tpu.memory_space<vmem>>, vector<14x8xf32>
    %cst = arith.constant dense<0.000000e+00> : vector<2x32xf32>
    %27 = tpu.matmul %25, %0, %cst {dimension_numbers = #tpu.dot_dimension_numbers<[1], [0], [0], [1], [0, 0, 1, 1], [], []>} : vector<2x8xf32>, vector<8x32xf32>, vector<2x32xf32> -> vector<2x32xf32>
    %28 = vector.broadcast %1 : vector<1x32xf32> to vector<2x32xf32>
    %29 = arith.addf %27, %28 : vector<2x32xf32>
    %cst_29 = arith.constant dense<0.000000e+00> : vector<2xf32>
    %30 = vector.multi_reduction <add>, %29, %cst_29 [1] : vector<2x32xf32> to vector<2xf32>
    %31 = vector.shape_cast %30 : vector<2xf32> to vector<2x1xf32>
    %cst_30 = arith.constant 3.200000e+01 : f32
    %32 = vector.broadcast %cst_30 : f32 to vector<2x1xf32>
    %33 = arith.divf %31, %32 : vector<2x1xf32>
    %34 = vector.broadcast %33 : vector<2x1xf32> to vector<2x32xf32>
    %35 = arith.subf %29, %34 : vector<2x32xf32>
    %36 = arith.mulf %35, %35 : vector<2x32xf32>
    %cst_31 = arith.constant dense<0.000000e+00> : vector<2xf32>
    %37 = vector.multi_reduction <add>, %36, %cst_31 [1] : vector<2x32xf32> to vector<2xf32>
    %38 = vector.shape_cast %37 : vector<2xf32> to vector<2x1xf32>
    %cst_32 = arith.constant 3.200000e+01 : f32
    %39 = vector.broadcast %cst_32 : f32 to vector<2x1xf32>
    %40 = arith.divf %38, %39 : vector<2x1xf32>
    %41 = vector.broadcast %33 : vector<2x1xf32> to vector<2x32xf32>
    %42 = arith.subf %29, %41 : vector<2x32xf32>
    %cst_33 = arith.constant 9.99999974E-6 : f32
    %43 = vector.broadcast %cst_33 : f32 to vector<2x1xf32>
    %44 = arith.addf %40, %43 : vector<2x1xf32>
    %45 = math.rsqrt %44 : vector<2x1xf32>
    %46 = vector.broadcast %45 : vector<2x1xf32> to vector<2x32xf32>
    %47 = arith.mulf %42, %46 : vector<2x32xf32>
    %48 = vector.broadcast %2 : vector<1x32xf32> to vector<2x32xf32>
    %49 = arith.mulf %47, %48 : vector<2x32xf32>
    %50 = vector.broadcast %3 : vector<1x32xf32> to vector<2x32xf32>
    %51 = arith.addf %49, %50 : vector<2x32xf32>
    %52 = math.tanh %51 : vector<2x32xf32>
    %cst_34 = arith.constant dense<0.000000e+00> : vector<14x32xf32>
    %53 = tpu.matmul %26, %4, %cst_34 {dimension_numbers = #tpu.dot_dimension_numbers<[1], [0], [0], [1], [0, 0, 1, 1], [], []>} : vector<14x8xf32>, vector<8x32xf32>, vector<14x32xf32> -> vector<14x32xf32>
    %cst_35 = arith.constant dense<0.000000e+00> : vector<2x32xf32>
    %54 = tpu.matmul %52, %5, %cst_35 {dimension_numbers = #tpu.dot_dimension_numbers<[1], [0], [0], [1], [0, 0, 1, 1], [], []>} : vector<2x32xf32>, vector<32x32xf32>, vector<2x32xf32> -> vector<2x32xf32>
    %cst_36 = arith.constant dense<0.000000e+00> : vector<14x32xf32>
    %55 = tpu.matmul %20, %54, %cst_36 {dimension_numbers = #tpu.dot_dimension_numbers<[1], [0], [0], [1], [0, 0, 1, 1], [], []>} : vector<14x2xf32>, vector<2x32xf32>, vector<14x32xf32> -> vector<14x32xf32>
    %56 = arith.addf %53, %55 : vector<14x32xf32>
    %57 = vector.broadcast %6 : vector<1x32xf32> to vector<14x32xf32>
    %58 = arith.addf %56, %57 : vector<14x32xf32>
    %cst_37 = arith.constant dense<0.000000e+00> : vector<14xf32>
    %59 = vector.multi_reduction <add>, %58, %cst_37 [1] : vector<14x32xf32> to vector<14xf32>
    %60 = vector.shape_cast %59 : vector<14xf32> to vector<14x1xf32>
    %cst_38 = arith.constant 3.200000e+01 : f32
    %61 = vector.broadcast %cst_38 : f32 to vector<14x1xf32>
    %62 = arith.divf %60, %61 : vector<14x1xf32>
    %63 = vector.broadcast %62 : vector<14x1xf32> to vector<14x32xf32>
    %64 = arith.subf %58, %63 : vector<14x32xf32>
    %65 = arith.mulf %64, %64 : vector<14x32xf32>
    %cst_39 = arith.constant dense<0.000000e+00> : vector<14xf32>
    %66 = vector.multi_reduction <add>, %65, %cst_39 [1] : vector<14x32xf32> to vector<14xf32>
    %67 = vector.shape_cast %66 : vector<14xf32> to vector<14x1xf32>
    %cst_40 = arith.constant 3.200000e+01 : f32
    %68 = vector.broadcast %cst_40 : f32 to vector<14x1xf32>
    %69 = arith.divf %67, %68 : vector<14x1xf32>
    %70 = vector.broadcast %62 : vector<14x1xf32> to vector<14x32xf32>
    %71 = arith.subf %58, %70 : vector<14x32xf32>
    %cst_41 = arith.constant 9.99999974E-6 : f32
    %72 = vector.broadcast %cst_41 : f32 to vector<14x1xf32>
    %73 = arith.addf %69, %72 : vector<14x1xf32>
    %74 = math.rsqrt %73 : vector<14x1xf32>
    %75 = vector.broadcast %74 : vector<14x1xf32> to vector<14x32xf32>
    %76 = arith.mulf %71, %75 : vector<14x32xf32>
    %77 = vector.broadcast %7 : vector<1x32xf32> to vector<14x32xf32>
    %78 = arith.mulf %76, %77 : vector<14x32xf32>
    %79 = vector.broadcast %8 : vector<1x32xf32> to vector<14x32xf32>
    %80 = arith.addf %78, %79 : vector<14x32xf32>
    %81 = math.tanh %80 : vector<14x32xf32>
    %cst_42 = arith.constant dense<0.000000e+00> : vector<16x32xf32>
    %82 = tpu.matmul %21, %52, %cst_42 {dimension_numbers = #tpu.dot_dimension_numbers<[1], [0], [0], [1], [0, 0, 1, 1], [], []>} : vector<16x2xf32>, vector<2x32xf32>, vector<16x32xf32> -> vector<16x32xf32>
    %cst_43 = arith.constant dense<0.000000e+00> : vector<16x32xf32>
    %83 = tpu.matmul %22, %81, %cst_43 {dimension_numbers = #tpu.dot_dimension_numbers<[1], [0], [0], [1], [0, 0, 1, 1], [], []>} : vector<16x14xf32>, vector<14x32xf32>, vector<16x32xf32> -> vector<16x32xf32>
    %84 = arith.addf %82, %83 : vector<16x32xf32>
    %cst_44 = arith.constant dense<0.000000e+00> : vector<16x64xf32>
    %85 = tpu.matmul %84, %9, %cst_44 {dimension_numbers = #tpu.dot_dimension_numbers<[1], [0], [0], [1], [0, 0, 1, 1], [], []>} : vector<16x32xf32>, vector<32x64xf32>, vector<16x64xf32> -> vector<16x64xf32>
    %86 = vector.broadcast %10 : vector<1x64xf32> to vector<16x64xf32>
    %87 = arith.addf %85, %86 : vector<16x64xf32>
    %cst_45 = arith.constant dense<0.000000e+00> : vector<16x128xf32>
    %88 = tpu.matmul %84, %11, %cst_45 {dimension_numbers = #tpu.dot_dimension_numbers<[1], [0], [0], [1], [0, 0, 1, 1], [], []>} : vector<16x32xf32>, vector<32x128xf32>, vector<16x128xf32> -> vector<16x128xf32>
    %cst_46 = arith.constant 0.000000e+00 : f32
    %89 = vector.broadcast %cst_46 : f32 to vector<16x32xf32>
    %90 = vector.extract_strided_slice %87 {offsets = [0, 0], sizes = [16, 8], strides = [1, 1]} : vector<16x64xf32> to vector<16x8xf32>
    %91 = vector.extract_strided_slice %87 {offsets = [0, 32], sizes = [16, 8], strides = [1, 1]} : vector<16x64xf32> to vector<16x8xf32>
    "tpu.trace_start"() <{level = 10 : i32, message = "qd,kd->qk"}> : () -> ()
    %cst_47 = arith.constant dense<0.000000e+00> : vector<16x16xf32>
    %92 = tpu.matmul %90, %91, %cst_47 {dimension_numbers = #tpu.dot_dimension_numbers<[1], [1], [0], [0], [0, 0, 1, 0], [], []>} : vector<16x8xf32>, vector<16x8xf32>, vector<16x16xf32> -> vector<16x16xf32>
    "tpu.trace_stop"() : () -> ()
    %cst_48 = arith.constant dense<0xFF800000> : vector<16xf32>
    %93 = vector.multi_reduction <maximumf>, %92, %cst_48 [1] : vector<16x16xf32> to vector<16xf32>
    %94 = vector.shape_cast %93 : vector<16xf32> to vector<16x1xf32>
    %95 = vector.broadcast %94 : vector<16x1xf32> to vector<16x16xf32>
    %96 = arith.subf %92, %95 : vector<16x16xf32>
    %97 = math.exp %96 : vector<16x16xf32>
    %98 = arith.mulf %97, %24 : vector<16x16xf32>
    %cst_49 = arith.constant dense<0.000000e+00> : vector<16xf32>
    %99 = vector.multi_reduction <add>, %98, %cst_49 [1] : vector<16x16xf32> to vector<16xf32>
    %100 = vector.shape_cast %99 : vector<16xf32> to vector<16x1xf32>
    %101 = tpu.reciprocal %100 {approx = true} : vector<16x1xf32> -> vector<16x1xf32>
    %102 = vector.broadcast %101 : vector<16x1xf32> to vector<16x16xf32>
    %103 = arith.mulf %98, %102 : vector<16x16xf32>
    %104 = vector.extract_strided_slice %88 {offsets = [0, 0], sizes = [16, 32], strides = [1, 1]} : vector<16x128xf32> to vector<16x32xf32>
    %cst_50 = arith.constant dense<0.000000e+00> : vector<16x32xf32>
    %105 = tpu.matmul %103, %104, %cst_50 {dimension_numbers = #tpu.dot_dimension_numbers<[1], [0], [0], [1], [0, 0, 1, 1], [], []>} : vector<16x16xf32>, vector<16x32xf32>, vector<16x32xf32> -> vector<16x32xf32>
    %106 = arith.addf %89, %105 : vector<16x32xf32>
    %107 = vector.extract_strided_slice %87 {offsets = [0, 8], sizes = [16, 8], strides = [1, 1]} : vector<16x64xf32> to vector<16x8xf32>
    %108 = vector.extract_strided_slice %87 {offsets = [0, 40], sizes = [16, 8], strides = [1, 1]} : vector<16x64xf32> to vector<16x8xf32>
    "tpu.trace_start"() <{level = 10 : i32, message = "qd,kd->qk"}> : () -> ()
    %cst_51 = arith.constant dense<0.000000e+00> : vector<16x16xf32>
    %109 = tpu.matmul %107, %108, %cst_51 {dimension_numbers = #tpu.dot_dimension_numbers<[1], [1], [0], [0], [0, 0, 1, 0], [], []>} : vector<16x8xf32>, vector<16x8xf32>, vector<16x16xf32> -> vector<16x16xf32>
    "tpu.trace_stop"() : () -> ()
    %cst_52 = arith.constant dense<0xFF800000> : vector<16xf32>
    %110 = vector.multi_reduction <maximumf>, %109, %cst_52 [1] : vector<16x16xf32> to vector<16xf32>
    %111 = vector.shape_cast %110 : vector<16xf32> to vector<16x1xf32>
    %112 = vector.broadcast %111 : vector<16x1xf32> to vector<16x16xf32>
    %113 = arith.subf %109, %112 : vector<16x16xf32>
    %114 = math.exp %113 : vector<16x16xf32>
    %115 = arith.mulf %114, %24 : vector<16x16xf32>
    %cst_53 = arith.constant dense<0.000000e+00> : vector<16xf32>
    %116 = vector.multi_reduction <add>, %115, %cst_53 [1] : vector<16x16xf32> to vector<16xf32>
    %117 = vector.shape_cast %116 : vector<16xf32> to vector<16x1xf32>
    %118 = tpu.reciprocal %117 {approx = true} : vector<16x1xf32> -> vector<16x1xf32>
    %119 = vector.broadcast %118 : vector<16x1xf32> to vector<16x16xf32>
    %120 = arith.mulf %115, %119 : vector<16x16xf32>
    %121 = vector.extract_strided_slice %88 {offsets = [0, 32], sizes = [16, 32], strides = [1, 1]} : vector<16x128xf32> to vector<16x32xf32>
    %cst_54 = arith.constant dense<0.000000e+00> : vector<16x32xf32>
    %122 = tpu.matmul %120, %121, %cst_54 {dimension_numbers = #tpu.dot_dimension_numbers<[1], [0], [0], [1], [0, 0, 1, 1], [], []>} : vector<16x16xf32>, vector<16x32xf32>, vector<16x32xf32> -> vector<16x32xf32>
    %123 = arith.addf %106, %122 : vector<16x32xf32>
    %124 = vector.extract_strided_slice %87 {offsets = [0, 16], sizes = [16, 8], strides = [1, 1]} : vector<16x64xf32> to vector<16x8xf32>
    %125 = vector.extract_strided_slice %87 {offsets = [0, 48], sizes = [16, 8], strides = [1, 1]} : vector<16x64xf32> to vector<16x8xf32>
    "tpu.trace_start"() <{level = 10 : i32, message = "qd,kd->qk"}> : () -> ()
    %cst_55 = arith.constant dense<0.000000e+00> : vector<16x16xf32>
    %126 = tpu.matmul %124, %125, %cst_55 {dimension_numbers = #tpu.dot_dimension_numbers<[1], [1], [0], [0], [0, 0, 1, 0], [], []>} : vector<16x8xf32>, vector<16x8xf32>, vector<16x16xf32> -> vector<16x16xf32>
    "tpu.trace_stop"() : () -> ()
    %cst_56 = arith.constant dense<0xFF800000> : vector<16xf32>
    %127 = vector.multi_reduction <maximumf>, %126, %cst_56 [1] : vector<16x16xf32> to vector<16xf32>
    %128 = vector.shape_cast %127 : vector<16xf32> to vector<16x1xf32>
    %129 = vector.broadcast %128 : vector<16x1xf32> to vector<16x16xf32>
    %130 = arith.subf %126, %129 : vector<16x16xf32>
    %131 = math.exp %130 : vector<16x16xf32>
    %132 = arith.mulf %131, %24 : vector<16x16xf32>
    %cst_57 = arith.constant dense<0.000000e+00> : vector<16xf32>
    %133 = vector.multi_reduction <add>, %132, %cst_57 [1] : vector<16x16xf32> to vector<16xf32>
    %134 = vector.shape_cast %133 : vector<16xf32> to vector<16x1xf32>
    %135 = tpu.reciprocal %134 {approx = true} : vector<16x1xf32> -> vector<16x1xf32>
    %136 = vector.broadcast %135 : vector<16x1xf32> to vector<16x16xf32>
    %137 = arith.mulf %132, %136 : vector<16x16xf32>
    %138 = vector.extract_strided_slice %88 {offsets = [0, 64], sizes = [16, 32], strides = [1, 1]} : vector<16x128xf32> to vector<16x32xf32>
    %cst_58 = arith.constant dense<0.000000e+00> : vector<16x32xf32>
    %139 = tpu.matmul %137, %138, %cst_58 {dimension_numbers = #tpu.dot_dimension_numbers<[1], [0], [0], [1], [0, 0, 1, 1], [], []>} : vector<16x16xf32>, vector<16x32xf32>, vector<16x32xf32> -> vector<16x32xf32>
    %140 = arith.addf %123, %139 : vector<16x32xf32>
    %141 = vector.extract_strided_slice %87 {offsets = [0, 24], sizes = [16, 8], strides = [1, 1]} : vector<16x64xf32> to vector<16x8xf32>
    %142 = vector.extract_strided_slice %87 {offsets = [0, 56], sizes = [16, 8], strides = [1, 1]} : vector<16x64xf32> to vector<16x8xf32>
    "tpu.trace_start"() <{level = 10 : i32, message = "qd,kd->qk"}> : () -> ()
    %cst_59 = arith.constant dense<0.000000e+00> : vector<16x16xf32>
    %143 = tpu.matmul %141, %142, %cst_59 {dimension_numbers = #tpu.dot_dimension_numbers<[1], [1], [0], [0], [0, 0, 1, 0], [], []>} : vector<16x8xf32>, vector<16x8xf32>, vector<16x16xf32> -> vector<16x16xf32>
    "tpu.trace_stop"() : () -> ()
    %cst_60 = arith.constant dense<0xFF800000> : vector<16xf32>
    %144 = vector.multi_reduction <maximumf>, %143, %cst_60 [1] : vector<16x16xf32> to vector<16xf32>
    %145 = vector.shape_cast %144 : vector<16xf32> to vector<16x1xf32>
    %146 = vector.broadcast %145 : vector<16x1xf32> to vector<16x16xf32>
    %147 = arith.subf %143, %146 : vector<16x16xf32>
    %148 = math.exp %147 : vector<16x16xf32>
    %149 = arith.mulf %148, %24 : vector<16x16xf32>
    %cst_61 = arith.constant dense<0.000000e+00> : vector<16xf32>
    %150 = vector.multi_reduction <add>, %149, %cst_61 [1] : vector<16x16xf32> to vector<16xf32>
    %151 = vector.shape_cast %150 : vector<16xf32> to vector<16x1xf32>
    %152 = tpu.reciprocal %151 {approx = true} : vector<16x1xf32> -> vector<16x1xf32>
    %153 = vector.broadcast %152 : vector<16x1xf32> to vector<16x16xf32>
    %154 = arith.mulf %149, %153 : vector<16x16xf32>
    %155 = vector.extract_strided_slice %88 {offsets = [0, 96], sizes = [16, 32], strides = [1, 1]} : vector<16x128xf32> to vector<16x32xf32>
    %cst_62 = arith.constant dense<0.000000e+00> : vector<16x32xf32>
    %156 = tpu.matmul %154, %155, %cst_62 {dimension_numbers = #tpu.dot_dimension_numbers<[1], [0], [0], [1], [0, 0, 1, 1], [], []>} : vector<16x16xf32>, vector<16x32xf32>, vector<16x32xf32> -> vector<16x32xf32>
    %157 = arith.addf %140, %156 : vector<16x32xf32>
    %158 = vector.broadcast %12 : vector<1x32xf32> to vector<16x32xf32>
    %159 = arith.addf %157, %158 : vector<16x32xf32>
    %cst_63 = arith.constant dense<0.000000e+00> : vector<16x32xf32>
    %160 = tpu.matmul %159, %13, %cst_63 {dimension_numbers = #tpu.dot_dimension_numbers<[1], [0], [0], [1], [0, 0, 1, 1], [], []>} : vector<16x32xf32>, vector<32x32xf32>, vector<16x32xf32> -> vector<16x32xf32>
    %161 = vector.broadcast %14 : vector<1x32xf32> to vector<16x32xf32>
    %162 = arith.addf %160, %161 : vector<16x32xf32>
    %163 = math.tanh %162 : vector<16x32xf32>
    %164 = arith.addf %84, %163 : vector<16x32xf32>
    %cst_64 = arith.constant dense<0.000000e+00> : vector<16xf32>
    %165 = vector.multi_reduction <add>, %164, %cst_64 [1] : vector<16x32xf32> to vector<16xf32>
    %166 = vector.shape_cast %165 : vector<16xf32> to vector<16x1xf32>
    %cst_65 = arith.constant 3.200000e+01 : f32
    %167 = vector.broadcast %cst_65 : f32 to vector<16x1xf32>
    %168 = arith.divf %166, %167 : vector<16x1xf32>
    %169 = vector.broadcast %168 : vector<16x1xf32> to vector<16x32xf32>
    %170 = arith.subf %164, %169 : vector<16x32xf32>
    %171 = arith.mulf %170, %170 : vector<16x32xf32>
    %cst_66 = arith.constant dense<0.000000e+00> : vector<16xf32>
    %172 = vector.multi_reduction <add>, %171, %cst_66 [1] : vector<16x32xf32> to vector<16xf32>
    %173 = vector.shape_cast %172 : vector<16xf32> to vector<16x1xf32>
    %cst_67 = arith.constant 3.200000e+01 : f32
    %174 = vector.broadcast %cst_67 : f32 to vector<16x1xf32>
    %175 = arith.divf %173, %174 : vector<16x1xf32>
    %176 = vector.broadcast %168 : vector<16x1xf32> to vector<16x32xf32>
    %177 = arith.subf %164, %176 : vector<16x32xf32>
    %cst_68 = arith.constant 9.99999974E-6 : f32
    %178 = vector.broadcast %cst_68 : f32 to vector<16x1xf32>
    %179 = arith.addf %175, %178 : vector<16x1xf32>
    %180 = math.rsqrt %179 : vector<16x1xf32>
    %181 = vector.broadcast %180 : vector<16x1xf32> to vector<16x32xf32>
    %182 = arith.mulf %177, %181 : vector<16x32xf32>
    %183 = vector.broadcast %15 : vector<1x32xf32> to vector<16x32xf32>
    %184 = arith.mulf %182, %183 : vector<16x32xf32>
    %185 = vector.broadcast %16 : vector<1x32xf32> to vector<16x32xf32>
    %186 = arith.addf %184, %185 : vector<16x32xf32>
    %cst_69 = arith.constant dense<0.000000e+00> : vector<2x32xf32>
    %187 = tpu.matmul %23, %186, %cst_69 {dimension_numbers = #tpu.dot_dimension_numbers<[1], [0], [0], [1], [0, 0, 1, 1], [], []>} : vector<2x16xf32>, vector<16x32xf32>, vector<2x32xf32> -> vector<2x32xf32>
    %cst_70 = arith.constant dense<0.000000e+00> : vector<2x128xf32>
    %188 = tpu.matmul %52, %17, %cst_70 {dimension_numbers = #tpu.dot_dimension_numbers<[1], [0], [0], [1], [0, 0, 1, 1], [], []>} : vector<2x32xf32>, vector<32x128xf32>, vector<2x128xf32> -> vector<2x128xf32>
    %cst_71 = arith.constant dense<0.000000e+00> : vector<2x128xf32>
    %189 = tpu.matmul %187, %18, %cst_71 {dimension_numbers = #tpu.dot_dimension_numbers<[1], [0], [0], [1], [0, 0, 1, 1], [], []>} : vector<2x32xf32>, vector<32x128xf32>, vector<2x128xf32> -> vector<2x128xf32>
    %190 = arith.addf %188, %189 : vector<2x128xf32>
    %191 = vector.broadcast %19 : vector<1x128xf32> to vector<2x128xf32>
    %192 = arith.addf %190, %191 : vector<2x128xf32>
    %193 = math.tanh %192 : vector<2x128xf32>
    %c0_72 = arith.constant 0 : index
    %c0_73 = arith.constant 0 : index
    %194 = vector.load %arg4[%c0_72, %c0_73] : memref<2x128xf32, #tpu.memory_space<vmem>>, vector<2x128xf32>
    tpu.vector_store %arg4[%c0_72, %c0_73], %193 {strides = array<i32>} : memref<2x128xf32, #tpu.memory_space<vmem>>, vector<2x128xf32>,
    return
  }
  func.func @transform_0(%arg0: i32) -> (i32, i32) {
    %c0_i32 = arith.constant 0 : i32
    %c0_i32_0 = arith.constant 0 : i32
    return %arg0, %c0_i32 : i32, i32
  }
  func.func @transform_1(%arg0: i32) -> (i32, i32) {
    %c0_i32 = arith.constant 0 : i32
    %c0_i32_0 = arith.constant 0 : i32
    return %arg0, %c0_i32 : i32, i32
  }
  func.func @transform_2(%arg0: i32) -> (i32, i32) {
    %c0_i32 = arith.constant 0 : i32
    %c0_i32_0 = arith.constant 0 : i32
    %c0_i32_1 = arith.constant 0 : i32
    return %c0_i32, %c0_i32_0 : i32, i32
  }
  func.func @transform_3(%arg0: i32) -> (i32, i32) {
    %c0_i32 = arith.constant 0 : i32
    %c0_i32_0 = arith.constant 0 : i32
    return %arg0, %c0_i32 : i32, i32
  }
}

</mosaic_0001>

<llo_original>
// kernel: tpu_custom_call.1
$region0: #{tpu_custom_call.1}
  #allocation0 [shape = 'u32[]', space=smem, size = 0x4, offset = 0x4, fixed_abs, tag = 'smem constant byte address 0x4 - core index']
  #allocation1 [shape = 'u32[144,128]{1,0:T(1,128)}', space=vmem, size = 0x12000, scoped, tag = 'internal scratch']
  %s0 = inlined_call_operand.vmem [shape: f32[2,8], index: 0, kind: input, shape index: {}]
  %s1 = inlined_call_operand.vmem [shape: f32[14,8], index: 1, kind: input, shape index: {}]
  %s2 = inlined_call_operand.hbm [shape: f32[376,128], index: 2, kind: input, shape index: {}]
  %s3 = inlined_call_operand.hbm [shape: f32[2,128], index: 3, kind: output, shape index: {}]
  %s4 = sld [smem:[#allocation0]]
  $region26: #{tpu_custom_call.1} parent=0
    _
  %s6 = ssub.s32 1, %s4
  %s7 = scalar_select 0, %s6, %s4
  $region1: #{tpu_custom_call.1} parent=0
    #allocation2 [shape = 'u8[192512]{0}', space=vmem, size = 0x2f000, scoped, tag = 'input window, operand 2, single buffered']
    #allocation3 [shape = 's32[1]{0}', space=sflag, size = 0x4, scoped, tag = 'scoped memory for tpu_custom_call.1']
    #allocation4 [shape = 's32[1]{0}', space=sflag, size = 0x4, scoped, tag = 'scoped memory for tpu_custom_call.1']
    #allocation5 [shape = 'u8[1024]{0}', space=vmem, size = 0x400, scoped, tag = 'output window, operand 0, single buffered']
    %8 = vsyncpa [#allocation3], 0
    %9 = vsyncpa [#allocation4], 0
    // Predicated region
    $region2: #{tpu_custom_call.1} parent=1 // pred_check
      _
    $region3: #{tpu_custom_call.1} parent=1 // pred_check_branch
      %11 = sbr.rel (0) target = $region5
    $region4: #{tpu_custom_call.1} parent=1 // pred_region
      _
    $region5: #{tpu_custom_call.1} parent=1 // pred_fallthru
      _
    // Predicated region
    $region6: #{tpu_custom_call.1} parent=1 // pred_check
      _
    $region7: #{tpu_custom_call.1} parent=1 // pred_check_branch
      %13 = sbr.rel (0) target = $region9
    $region8: #{tpu_custom_call.1} parent=1 // pred_region
      _
    $region9: #{tpu_custom_call.1} parent=1 // pred_fallthru
      _
    // Predicated region
    $region10: #{tpu_custom_call.1} parent=1 // pred_check
      _
    $region11: #{tpu_custom_call.1} parent=1 // pred_check_branch
      %15 = sbr.rel (0) target = $region13
    $region12: #{tpu_custom_call.1} parent=1 // pred_region
      %s17 = ssub.s32 6016, 6016
      %18 = vsyncadd [#allocation3], %s17
      %s19 = sshll.u32 [#allocation2], 4
      %s20 = int_to_ptr.vmem [resolvable:$true] %s19
      %25 = dma.hbm_to_vmem [thread:$0]  %s2, 6016, %s20, [#allocation3], 128, 128, 8
    $region13: #{tpu_custom_call.1} parent=1 // pred_fallthru
      _
    // Predicated region
    $region14: #{tpu_custom_call.1} parent=1 // pred_check
      _
    $region15: #{tpu_custom_call.1} parent=1 // pred_check_branch
      %27 = sbr.rel (0) target = $region17
    $region16: #{tpu_custom_call.1} parent=1 // pred_region
      %28 = dma.done [#allocation3], 6016
    $region17: #{tpu_custom_call.1} parent=1 // pred_fallthru
      _
    %v29 = vld [vmem:[#allocation2] sm:$0xff]
    %v30 = vld [vmem:[#allocation2 + $0xd0] sm:$0x1]
    %v31 = vld [vmem:[#allocation2 + $0xd8] sm:$0x1]
    %v32 = vld [vmem:[#allocation2 + $0xe0] sm:$0x1]
    %v33 = vld [vmem:[#allocation2 + $0x8] sm:$0xff]
    %v34 = vld [vmem:[#allocation2 + $0x10] sm:$0xff]
    %v35 = vld [vmem:[#allocation2 + $0x18] sm:$0xff]
    %v36 = vld [vmem:[#allocation2 + $0x20] sm:$0xff]
    %v37 = vld [vmem:[#allocation2 + $0x28] sm:$0xff]
    %v38 = vld [vmem:[#allocation2 + $0xe8] sm:$0x1]
    %v39 = vld [vmem:[#allocation2 + $0xf0] sm:$0x1]
    %v40 = vld [vmem:[#allocation2 + $0xf8] sm:$0x1]
    %v41 = vld [vmem:[#allocation2 + $0x30] sm:$0xff]
    %v42 = vld [vmem:[#allocation2 + $0x38] sm:$0xff]
    %v43 = vld [vmem:[#allocation2 + $0x40] sm:$0xff]
    %v44 = vld [vmem:[#allocation2 + $0x48] sm:$0xff]
    %v45 = vld [vmem:[#allocation2 + $0x100] sm:$0x1]
    %v46 = vld [vmem:[#allocation2 + $0x50] sm:$0xff]
    %v47 = vld [vmem:[#allocation2 + $0x58] sm:$0xff]
    %v48 = vld [vmem:[#allocation2 + $0x60] sm:$0xff]
    %v49 = vld [vmem:[#allocation2 + $0x68] sm:$0xff]
    %v50 = vld [vmem:[#allocation2 + $0x108] sm:$0x1]
    %v51 = vld [vmem:[#allocation2 + $0x70] sm:$0xff]
    %v52 = vld [vmem:[#allocation2 + $0x78] sm:$0xff]
    %v53 = vld [vmem:[#allocation2 + $0x80] sm:$0xff]
    %v54 = vld [vmem:[#allocation2 + $0x88] sm:$0xff]
    %v55 = vld [vmem:[#allocation2 + $0x110] sm:$0x1]
    %v56 = vld [vmem:[#allocation2 + $0x118] sm:$0x1]
    %v57 = vld [vmem:[#allocation2 + $0x120] sm:$0x1]
    %v58 = vld [vmem:[#allocation2 + $0x90] sm:$0xff]
    %v59 = vld [vmem:[#allocation2 + $0x98] sm:$0xff]
    %v60 = vld [vmem:[#allocation2 + $0xa0] sm:$0xff]
    %v61 = vld [vmem:[#allocation2 + $0xa8] sm:$0xff]
    %v62 = vld [vmem:[#allocation2 + $0xb0] sm:$0xff]
    %v63 = vld [vmem:[#allocation2 + $0xb8] sm:$0xff]
    %v64 = vld [vmem:[#allocation2 + $0xc0] sm:$0xff]
    %v65 = vld [vmem:[#allocation2 + $0xc8] sm:$0xff]
    %v66 = vld [vmem:[#allocation2 + $0x128] sm:$0x1]
    %v67 = vld [vmem:[#allocation2 + $0x130] sm:$0xff]
    %v68 = vld [vmem:[#allocation2 + $0x138] sm:$0x3f]
    %v69 = vld [vmem:[#allocation2 + $0x140] sm:$0xff]
    %v70 = vld [vmem:[#allocation2 + $0x148] sm:$0xff]
    %v71 = vld [vmem:[#allocation2 + $0x150] sm:$0xff]
    %v72 = vld [vmem:[#allocation2 + $0x158] sm:$0xff]
    %v73 = vld [vmem:[#allocation2 + $0x160] sm:$0x3]
    %v74 = vld [vmem:[#allocation2 + $0x168] sm:$0xff]
    %v75 = vld [vmem:[#allocation2 + $0x170] sm:$0xff]
    %v76 = vld [vmem:[%s0] sm:$0x3]
    %v77 = vld [vmem:[%s1] sm:$0xff]
    %v78 = vld [vmem:[%s1 + $0x8] sm:$0x3f]
    %v79 = vlaneseq
    %v80 = vshrl.u32 %v79, 7
    %v81 = vsub.s32 0, %v80
    %v82 = vrot.slane %v30, %v81
    %vm83 = vcmask 64512
    %v85 = vsel %vm83, %v76, 0
    %87 = vmatprep.subr.mxu0 0.0
    %88 = vmatpush1.msra.mxu0 0.0
    %89 = vmatprep.subr.mxu0 0.0
    %90 = vmatpush1.msra.mxu0 0.0
    %91 = vmatprep.subr.mxu0 0.0
    %92 = vmatpush1.msra.mxu0 0.0
    %93 = vmatprep.subr.mxu0 0.0
    %94 = vmatpush1.msra.mxu0 0.0
    %95 = vmatprep.subr.mxu0 0.0
    %96 = vmatpush1.msra.mxu0 0.0
    %97 = vmatprep.subr.mxu0 0.0
    %98 = vmatpush1.msra.mxu0 0.0
    %99 = vmatprep.subr.mxu0 0.0
    %100 = vmatpush1.msra.mxu0 0.0
    %101 = vmatprep.subr.mxu0 0.0
    %102 = vmatpush1.msra.mxu0 0.0
    %103 = vmatprep.subr.mxu0 0.0
    %104 = vmatpush1.msra.mxu0 0.0
    %105 = vmatprep.subr.mxu0 0.0
    %106 = vmatpush1.msra.mxu0 0.0
    %107 = vmatprep.subr.mxu0 0.0
    %108 = vmatpush1.msra.mxu0 0.0
    %109 = vmatprep.subr.mxu0 0.0
    %110 = vmatpush1.msra.mxu0 0.0
    %111 = vmatprep.subr.mxu0 0.0
    %112 = vmatpush1.msra.mxu0 0.0
    %113 = vmatprep.subr.mxu0 0.0
    %114 = vmatpush1.msra.mxu0 0.0
    %115 = vmatprep.subr.mxu0 0.0
    %116 = vmatpush1.msra.mxu0 0.0
    %117 = vmatprep.subr.mxu0 0.0
    %118 = vmatpush1.msra.mxu0 %v29
    %119 = vmatprep.subr.mxu0 0.0
    %120 = vmatpush2.msra.mxu0 0.0
    %121 = vmatprep.subr.mxu0 0.0
    %122 = vmatpush2.msra.mxu0 0.0
    %123 = vmatprep.subr.mxu0 0.0
    %124 = vmatpush2.msra.mxu0 0.0
    %125 = vmatprep.subr.mxu0 0.0
    %126 = vmatpush2.msra.mxu0 0.0
    %127 = vmatprep.subr.mxu0 0.0
    %128 = vmatpush2.msra.mxu0 0.0
    %129 = vmatprep.subr.mxu0 0.0
    %130 = vmatpush2.msra.mxu0 0.0
    %131 = vmatprep.subr.mxu0 0.0
    %132 = vmatpush2.msra.mxu0 0.0
    %133 = vmatprep.subr.mxu0 0.0
    %134 = vmatpush2.msra.mxu0 0.0
    %135 = vmatprep.subr.mxu0 0.0
    %136 = vmatpush2.msra.mxu0 0.0
    %137 = vmatprep.subr.mxu0 0.0
    %138 = vmatpush2.msra.mxu0 0.0
    %139 = vmatprep.subr.mxu0 0.0
    %140 = vmatpush2.msra.mxu0 0.0
    %141 = vmatprep.subr.mxu0 0.0
    %142 = vmatpush2.msra.mxu0 0.0
    %143 = vmatprep.subr.mxu0 0.0
    %144 = vmatpush2.msra.mxu0 0.0
    %145 = vmatprep.subr.mxu0 0.0
    %146 = vmatpush2.msra.mxu0 0.0
    %147 = vmatprep.subr.mxu0 0.0
    %148 = vmatpush2.msra.mxu0 0.0
    %149 = vmatprep.subr.mxu0 0.0
    %150 = vmatpush2.msra.mxu0 0.0
    %151 = vmatprep.mubr.f32.mxu0 0.0
    %152 = vmatmul.mubr.f32.gmra.mxu0 %v85
    %v153 = vpop.f32.mrf.mxu0
    %v154 = vadd.f32 %v82, %v153
    %v155 = vpop.f32.mrf.mxu0
    %156 = vdwg.mxu0
    %vm157 = vcmask 254976
    %v158 = vsel %vm157, %v154, 0.0
    %159 = vadd.xlane.f32.xlu0 %v158
    %v160 = vpop.xlane.xlu0 %159
    %v161 = vrcp.pop 32.0
    %v162 = vmul.f32 %v160, %v161
    %v163 = vsub.f32 %v154, %v162
    %v164 = vmul.f32 %v163, %v163
    %v165 = vsel %vm157, %v164, 0.0
    %166 = vadd.xlane.f32.xlu0 %v165
    %v167 = vpop.xlane.xlu0 %166
    %v168 = vmul.f32 %v167, %v161
    %v169 = vadd.f32 %v168, 1e-05
    %v170 = vrsqrt.pop %v169
    %v171 = vmul.f32 %v163, %v170
    %v172 = vlaneseq
    %v173 = vshrl.u32 %v172, 7
    %v174 = vsub.s32 0, %v173
    %v175 = vrot.slane %v31, %v174
    %v176 = vmul.f32 %v171, %v175
    %v177 = vlaneseq
    %v178 = vshrl.u32 %v177, 7
    %v179 = vsub.s32 0, %v178
    %v180 = vrot.slane %v32, %v179
    %v181 = vadd.f32 %v176, %v180
    %v182 = vtanh.pop %v181
    %vm183 = vcmask 261120
    %v185 = vsel %vm183, %v182, 0
    %187 = vmatprep.subr.mxu0 0.0
    %188 = vmatpush1.msra.mxu0 0.0
    %189 = vmatprep.subr.mxu0 0.0
    %190 = vmatpush1.msra.mxu0 0.0
    %191 = vmatprep.subr.mxu0 0.0
    %192 = vmatpush1.msra.mxu0 0.0
    %193 = vmatprep.subr.mxu0 0.0
    %194 = vmatpush1.msra.mxu0 0.0
    %195 = vmatprep.subr.mxu0 0.0
    %196 = vmatpush1.msra.mxu0 0.0
    %197 = vmatprep.subr.mxu0 0.0
    %198 = vmatpush1.msra.mxu0 0.0
    %199 = vmatprep.subr.mxu0 0.0
    %200 = vmatpush1.msra.mxu0 0.0
    %201 = vmatprep.subr.mxu0 0.0
    %202 = vmatpush1.msra.mxu0 0.0
    %203 = vmatprep.subr.mxu0 0.0
    %204 = vmatpush1.msra.mxu0 0.0
    %205 = vmatprep.subr.mxu0 0.0
    %206 = vmatpush1.msra.mxu0 0.0
    %207 = vmatprep.subr.mxu0 0.0
    %208 = vmatpush1.msra.mxu0 0.0
    %209 = vmatprep.subr.mxu0 0.0
    %210 = vmatpush1.msra.mxu0 0.0
    %211 = vmatprep.subr.mxu0 0.0
    %212 = vmatpush1.msra.mxu0 %v37
    %213 = vmatprep.subr.mxu0 0.0
    %214 = vmatpush1.msra.mxu0 %v36
    %215 = vmatprep.subr.mxu0 0.0
    %216 = vmatpush1.msra.mxu0 %v35
    %217 = vmatprep.subr.mxu0 0.0
    %218 = vmatpush1.msra.mxu0 %v34
    %219 = vmatprep.subr.mxu0 0.0
    %220 = vmatpush2.msra.mxu0 0.0
    %221 = vmatprep.subr.mxu0 0.0
    %222 = vmatpush2.msra.mxu0 0.0
    %223 = vmatprep.subr.mxu0 0.0
    %224 = vmatpush2.msra.mxu0 0.0
    %225 = vmatprep.subr.mxu0 0.0
    %226 = vmatpush2.msra.mxu0 0.0
    %227 = vmatprep.subr.mxu0 0.0
    %228 = vmatpush2.msra.mxu0 0.0
    %229 = vmatprep.subr.mxu0 0.0
    %230 = vmatpush2.msra.mxu0 0.0
    %231 = vmatprep.subr.mxu0 0.0
    %232 = vmatpush2.msra.mxu0 0.0
    %233 = vmatprep.subr.mxu0 0.0
    %234 = vmatpush2.msra.mxu0 0.0
    %235 = vmatprep.subr.mxu0 0.0
    %236 = vmatpush2.msra.mxu0 0.0
    %237 = vmatprep.subr.mxu0 0.0
    %238 = vmatpush2.msra.mxu0 0.0
    %239 = vmatprep.subr.mxu0 0.0
    %240 = vmatpush2.msra.mxu0 0.0
    %241 = vmatprep.subr.mxu0 0.0
    %242 = vmatpush2.msra.mxu0 0.0
    %243 = vmatprep.subr.mxu0 0.0
    %244 = vmatpush2.msra.mxu0 0.0
    %245 = vmatprep.subr.mxu0 0.0
    %246 = vmatpush2.msra.mxu0 0.0
    %247 = vmatprep.subr.mxu0 0.0
    %248 = vmatpush2.msra.mxu0 0.0
    %249 = vmatprep.subr.mxu0 0.0
    %250 = vmatpush2.msra.mxu0 0.0
    %251 = vmatprep.mubr.f32.mxu0 0.0
    %252 = vmatmul.mubr.f32.gmra.mxu0 %v185
    %v253 = vpop.f32.mrf.mxu0
    %v254 = vadd.f32 0.0, %v253
    %v255 = vpop.f32.mrf.mxu0
    %256 = vdwg.mxu0
    %vm257 = vcmask 15360
    %v259 = vsel %vm257, %v67, 0
    %v262 = vsel %vm257, %v68, 0
    %vm264 = vcmask 1041408
    %v266 = vsel %vm264, %v254, 0
    %268 = vmatprep.subr.mxu0 0.0
    %269 = vmatpush1.msra.mxu0 0.0
    %270 = vmatprep.subr.mxu0 0.0
    %271 = vmatpush1.msra.mxu0 0.0
    %272 = vmatprep.subr.mxu0 0.0
    %273 = vmatpush1.msra.mxu0 0.0
    %274 = vmatprep.subr.mxu0 0.0
    %275 = vmatpush1.msra.mxu0 0.0
    %276 = vmatprep.subr.mxu0 0.0
    %277 = vmatpush1.msra.mxu0 0.0
    %278 = vmatprep.subr.mxu0 0.0
    %279 = vmatpush1.msra.mxu0 0.0
    %280 = vmatprep.subr.mxu0 0.0
    %281 = vmatpush1.msra.mxu0 0.0
    %282 = vmatprep.subr.mxu0 0.0
    %283 = vmatpush1.msra.mxu0 0.0
    %284 = vmatprep.subr.mxu0 0.0
    %285 = vmatpush1.msra.mxu0 0.0
    %286 = vmatprep.subr.mxu0 0.0
    %287 = vmatpush1.msra.mxu0 0.0
    %288 = vmatprep.subr.mxu0 0.0
    %289 = vmatpush1.msra.mxu0 0.0
    %290 = vmatprep.subr.mxu0 0.0
    %291 = vmatpush1.msra.mxu0 0.0
    %292 = vmatprep.subr.mxu0 0.0
    %293 = vmatpush1.msra.mxu0 0.0
    %294 = vmatprep.subr.mxu0 0.0
    %295 = vmatpush1.msra.mxu0 0.0
    %296 = vmatprep.subr.mxu0 0.0
    %297 = vmatpush1.msra.mxu0 0.0
    %298 = vmatprep.subr.mxu0 0.0
    %299 = vmatpush1.msra.mxu0 %v266
    %300 = vmatprep.subr.mxu0 0.0
    %301 = vmatpush2.msra.mxu0 0.0
    %302 = vmatprep.subr.mxu0 0.0
    %303 = vmatpush2.msra.mxu0 0.0
    %304 = vmatprep.subr.mxu0 0.0
    %305 = vmatpush2.msra.mxu0 0.0
    %306 = vmatprep.subr.mxu0 0.0
    %307 = vmatpush2.msra.mxu0 0.0
    %308 = vmatprep.subr.mxu0 0.0
    %309 = vmatpush2.msra.mxu0 0.0
    %310 = vmatprep.subr.mxu0 0.0
    %311 = vmatpush2.msra.mxu0 0.0
    %312 = vmatprep.subr.mxu0 0.0
    %313 = vmatpush2.msra.mxu0 0.0
    %314 = vmatprep.subr.mxu0 0.0
    %315 = vmatpush2.msra.mxu0 0.0
    %316 = vmatprep.subr.mxu0 0.0
    %317 = vmatpush2.msra.mxu0 0.0
    %318 = vmatprep.subr.mxu0 0.0
    %319 = vmatpush2.msra.mxu0 0.0
    %320 = vmatprep.subr.mxu0 0.0
    %321 = vmatpush2.msra.mxu0 0.0
    %322 = vmatprep.subr.mxu0 0.0
    %323 = vmatpush2.msra.mxu0 0.0
    %324 = vmatprep.subr.mxu0 0.0
    %325 = vmatpush2.msra.mxu0 0.0
    %326 = vmatprep.subr.mxu0 0.0
    %327 = vmatpush2.msra.mxu0 0.0
    %328 = vmatprep.subr.mxu0 0.0
    %329 = vmatpush2.msra.mxu0 0.0
    %330 = vmatprep.subr.mxu0 0.0
    %331 = vmatpush2.msra.mxu0 0.0
    %332 = vmatprep.mubr.f32.mxu0 0.0
    %333 = vmatmul.mubr.f32.gmra.mxu0 %v259
    %v334 = vpop.f32.mrf.mxu0
    %v335 = vadd.f32 0.0, %v334
    %v336 = vpop.f32.mrf.mxu0
    %337 = vmatprep.mubr.f32.mxu0 0.0
    %338 = vmatmul.mubr.f32.gmra.mxu0 %v262
    %v339 = vpop.f32.mrf.mxu0
    %v340 = vadd.f32 0.0, %v339
    %v341 = vpop.f32.mrf.mxu0
    %342 = vdwg.mxu0
    %v344 = vsel %vm83, %v77, 0
    %v347 = vsel %vm83, %v78, 0
    %349 = vmatprep.subr.mxu0 0.0
    %350 = vmatpush1.msra.mxu0 0.0
    %351 = vmatprep.subr.mxu0 0.0
    %352 = vmatpush1.msra.mxu0 0.0
    %353 = vmatprep.subr.mxu0 0.0
    %354 = vmatpush1.msra.mxu0 0.0
    %355 = vmatprep.subr.mxu0 0.0
    %356 = vmatpush1.msra.mxu0 0.0
    %357 = vmatprep.subr.mxu0 0.0
    %358 = vmatpush1.msra.mxu0 0.0
    %359 = vmatprep.subr.mxu0 0.0
    %360 = vmatpush1.msra.mxu0 0.0
    %361 = vmatprep.subr.mxu0 0.0
    %362 = vmatpush1.msra.mxu0 0.0
    %363 = vmatprep.subr.mxu0 0.0
    %364 = vmatpush1.msra.mxu0 0.0
    %365 = vmatprep.subr.mxu0 0.0
    %366 = vmatpush1.msra.mxu0 0.0
    %367 = vmatprep.subr.mxu0 0.0
    %368 = vmatpush1.msra.mxu0 0.0
    %369 = vmatprep.subr.mxu0 0.0
    %370 = vmatpush1.msra.mxu0 0.0
    %371 = vmatprep.subr.mxu0 0.0
    %372 = vmatpush1.msra.mxu0 0.0
    %373 = vmatprep.subr.mxu0 0.0
    %374 = vmatpush1.msra.mxu0 0.0
    %375 = vmatprep.subr.mxu0 0.0
    %376 = vmatpush1.msra.mxu0 0.0
    %377 = vmatprep.subr.mxu0 0.0
    %378 = vmatpush1.msra.mxu0 0.0
    %379 = vmatprep.subr.mxu0 0.0
    %380 = vmatpush1.msra.mxu0 %v33
    %381 = vmatprep.subr.mxu0 0.0
    %382 = vmatpush2.msra.mxu0 0.0
    %383 = vmatprep.subr.mxu0 0.0
    %384 = vmatpush2.msra.mxu0 0.0
    %385 = vmatprep.subr.mxu0 0.0
    %386 = vmatpush2.msra.mxu0 0.0
    %387 = vmatprep.subr.mxu0 0.0
    %388 = vmatpush2.msra.mxu0 0.0
    %389 = vmatprep.subr.mxu0 0.0
    %390 = vmatpush2.msra.mxu0 0.0
    %391 = vmatprep.subr.mxu0 0.0
    %392 = vmatpush2.msra.mxu0 0.0
    %393 = vmatprep.subr.mxu0 0.0
    %394 = vmatpush2.msra.mxu0 0.0
    %395 = vmatprep.subr.mxu0 0.0
    %396 = vmatpush2.msra.mxu0 0.0
    %397 = vmatprep.subr.mxu0 0.0
    %398 = vmatpush2.msra.mxu0 0.0
    %399 = vmatprep.subr.mxu0 0.0
    %400 = vmatpush2.msra.mxu0 0.0
    %401 = vmatprep.subr.mxu0 0.0
    %402 = vmatpush2.msra.mxu0 0.0
    %403 = vmatprep.subr.mxu0 0.0
    %404 = vmatpush2.msra.mxu0 0.0
    %405 = vmatprep.subr.mxu0 0.0
    %406 = vmatpush2.msra.mxu0 0.0
    %407 = vmatprep.subr.mxu0 0.0
    %408 = vmatpush2.msra.mxu0 0.0
    %409 = vmatprep.subr.mxu0 0.0
    %410 = vmatpush2.msra.mxu0 0.0
    %411 = vmatprep.subr.mxu0 0.0
    %412 = vmatpush2.msra.mxu0 0.0
    %413 = vmatprep.mubr.f32.mxu0 0.0
    %414 = vmatmul.mubr.f32.gmra.mxu0 %v344
    %v415 = vpop.f32.mrf.mxu0
    %v416 = vadd.f32 %v335, %v415
    %v417 = vpop.f32.mrf.mxu0
    %418 = vmatprep.mubr.f32.mxu0 0.0
    %419 = vmatmul.mubr.f32.gmra.mxu0 %v347
    %v420 = vpop.f32.mrf.mxu0
    %v421 = vadd.f32 %v340, %v420
    %v422 = vpop.f32.mrf.mxu0
    %423 = vdwg.mxu0
    %v424 = vlaneseq
    %v425 = vshrl.u32 %v424, 7
    %v426 = vsub.s32 0, %v425
    %v427 = vrot.slane %v38, %v426
    %v428 = vadd.f32 %v416, %v427
    %v429 = vadd.f32 %v421, %v427
    %v430 = vsel %vm183, %v428, 0.0
    %431 = vadd.xlane.f32.xlu0 %v430
    %v432 = vpop.xlane.xlu0 %431
    %vm433 = vcmask 259072
    %v434 = vsel %vm433, %v429, 0.0
    %435 = vadd.xlane.f32.xlu0 %v434
    %v436 = vpop.xlane.xlu0 %435
    %v437 = vmul.f32 %v432, %v161
    %v438 = vmul.f32 %v436, %v161
    %v439 = vsub.f32 %v428, %v437
    %v440 = vsub.f32 %v429, %v438
    %v441 = vmul.f32 %v439, %v439
    %v442 = vmul.f32 %v440, %v440
    %v443 = vsel %vm183, %v441, 0.0
    %444 = vadd.xlane.f32.xlu0 %v443
    %v445 = vpop.xlane.xlu0 %444
    %v446 = vsel %vm433, %v442, 0.0
    %447 = vadd.xlane.f32.xlu0 %v446
    %v448 = vpop.xlane.xlu0 %447
    %v449 = vmul.f32 %v445, %v161
    %v450 = vmul.f32 %v448, %v161
    %v451 = vadd.f32 %v449, 1e-05
    %v452 = vadd.f32 %v450, 1e-05
    %v453 = vrsqrt.pop %v451
    %v454 = vrsqrt.pop %v452
    %v455 = vmul.f32 %v439, %v453
    %v456 = vmul.f32 %v440, %v454
    %v457 = vlaneseq
    %v458 = vshrl.u32 %v457, 7
    %v459 = vsub.s32 0, %v458
    %v460 = vrot.slane %v39, %v459
    %v461 = vmul.f32 %v455, %v460
    %v462 = vmul.f32 %v456, %v460
    %v463 = vlaneseq
    %v464 = vshrl.u32 %v463, 7
    %v465 = vsub.s32 0, %v464
    %v466 = vrot.slane %v40, %v465
    %v467 = vadd.f32 %v461, %v466
    %v468 = vadd.f32 %v462, %v466
    %v469 = vtanh.pop %v467
    %v470 = vtanh.pop %v468
    %vm471 = vcmask 113664
    %v473 = vsel %vm471, %v71, 0
    %v476 = vsel %vm471, %v72, 0
    %vm478 = vcmask 1045504
    %v480 = vsel %vm478, %v470, 0
    %482 = vmatprep.subr.mxu0 0.0
    %483 = vmatpush1.msra.mxu0 0.0
    %484 = vmatprep.subr.mxu0 0.0
    %485 = vmatpush1.msra.mxu0 0.0
    %486 = vmatprep.subr.mxu0 0.0
    %487 = vmatpush1.msra.mxu0 0.0
    %488 = vmatprep.subr.mxu0 0.0
    %489 = vmatpush1.msra.mxu0 0.0
    %490 = vmatprep.subr.mxu0 0.0
    %491 = vmatpush1.msra.mxu0 0.0
    %492 = vmatprep.subr.mxu0 0.0
    %493 = vmatpush1.msra.mxu0 0.0
    %494 = vmatprep.subr.mxu0 0.0
    %495 = vmatpush1.msra.mxu0 0.0
    %496 = vmatprep.subr.mxu0 0.0
    %497 = vmatpush1.msra.mxu0 0.0
    %498 = vmatprep.subr.mxu0 0.0
    %499 = vmatpush1.msra.mxu0 0.0
    %500 = vmatprep.subr.mxu0 0.0
    %501 = vmatpush1.msra.mxu0 0.0
    %502 = vmatprep.subr.mxu0 0.0
    %503 = vmatpush1.msra.mxu0 0.0
    %504 = vmatprep.subr.mxu0 0.0
    %505 = vmatpush1.msra.mxu0 0.0
    %506 = vmatprep.subr.mxu0 0.0
    %507 = vmatpush1.msra.mxu0 0.0
    %508 = vmatprep.subr.mxu0 0.0
    %509 = vmatpush1.msra.mxu0 0.0
    %510 = vmatprep.subr.mxu0 0.0
    %511 = vmatpush1.msra.mxu0 %v480
    %512 = vmatprep.subr.mxu0 0.0
    %513 = vmatpush1.msra.mxu0 %v469
    %514 = vmatprep.subr.mxu0 0.0
    %515 = vmatpush2.msra.mxu0 0.0
    %516 = vmatprep.subr.mxu0 0.0
    %517 = vmatpush2.msra.mxu0 0.0
    %518 = vmatprep.subr.mxu0 0.0
    %519 = vmatpush2.msra.mxu0 0.0
    %520 = vmatprep.subr.mxu0 0.0
    %521 = vmatpush2.msra.mxu0 0.0
    %522 = vmatprep.subr.mxu0 0.0
    %523 = vmatpush2.msra.mxu0 0.0
    %524 = vmatprep.subr.mxu0 0.0
    %525 = vmatpush2.msra.mxu0 0.0
    %526 = vmatprep.subr.mxu0 0.0
    %527 = vmatpush2.msra.mxu0 0.0
    %528 = vmatprep.subr.mxu0 0.0
    %529 = vmatpush2.msra.mxu0 0.0
    %530 = vmatprep.subr.mxu0 0.0
    %531 = vmatpush2.msra.mxu0 0.0
    %532 = vmatprep.subr.mxu0 0.0
    %533 = vmatpush2.msra.mxu0 0.0
    %534 = vmatprep.subr.mxu0 0.0
    %535 = vmatpush2.msra.mxu0 0.0
    %536 = vmatprep.subr.mxu0 0.0
    %537 = vmatpush2.msra.mxu0 0.0
    %538 = vmatprep.subr.mxu0 0.0
    %539 = vmatpush2.msra.mxu0 0.0
    %540 = vmatprep.subr.mxu0 0.0
    %541 = vmatpush2.msra.mxu0 0.0
    %542 = vmatprep.subr.mxu0 0.0
    %543 = vmatpush2.msra.mxu0 0.0
    %544 = vmatprep.subr.mxu0 0.0
    %545 = vmatpush2.msra.mxu0 0.0
    %546 = vmatprep.mubr.f32.mxu0 0.0
    %547 = vmatmul.mubr.f32.gmra.mxu0 %v473
    %v548 = vpop.f32.mrf.mxu0
    %v549 = vadd.f32 0.0, %v548
    %v550 = vpop.f32.mrf.mxu0
    %551 = vmatprep.mubr.f32.mxu0 0.0
    %552 = vmatmul.mubr.f32.gmra.mxu0 %v476
    %v553 = vpop.f32.mrf.mxu0
    %v554 = vadd.f32 0.0, %v553
    %v555 = vpop.f32.mrf.mxu0
    %556 = vdwg.mxu0
    %v558 = vsel %vm257, %v69, 0
    %v561 = vsel %vm257, %v70, 0
    %v563 = vsel %vm264, %v182, 0
    %565 = vmatprep.subr.mxu0 0.0
    %566 = vmatpush1.msra.mxu0 0.0
    %567 = vmatprep.subr.mxu0 0.0
    %568 = vmatpush1.msra.mxu0 0.0
    %569 = vmatprep.subr.mxu0 0.0
    %570 = vmatpush1.msra.mxu0 0.0
    %571 = vmatprep.subr.mxu0 0.0
    %572 = vmatpush1.msra.mxu0 0.0
    %573 = vmatprep.subr.mxu0 0.0
    %574 = vmatpush1.msra.mxu0 0.0
    %575 = vmatprep.subr.mxu0 0.0
    %576 = vmatpush1.msra.mxu0 0.0
    %577 = vmatprep.subr.mxu0 0.0
    %578 = vmatpush1.msra.mxu0 0.0
    %579 = vmatprep.subr.mxu0 0.0
    %580 = vmatpush1.msra.mxu0 0.0
    %581 = vmatprep.subr.mxu0 0.0
    %582 = vmatpush1.msra.mxu0 0.0
    %583 = vmatprep.subr.mxu0 0.0
    %584 = vmatpush1.msra.mxu0 0.0
    %585 = vmatprep.subr.mxu0 0.0
    %586 = vmatpush1.msra.mxu0 0.0
    %587 = vmatprep.subr.mxu0 0.0
    %588 = vmatpush1.msra.mxu0 0.0
    %589 = vmatprep.subr.mxu0 0.0
    %590 = vmatpush1.msra.mxu0 0.0
    %591 = vmatprep.subr.mxu0 0.0
    %592 = vmatpush1.msra.mxu0 0.0
    %593 = vmatprep.subr.mxu0 0.0
    %594 = vmatpush1.msra.mxu0 0.0
    %595 = vmatprep.subr.mxu0 0.0
    %596 = vmatpush1.msra.mxu0 %v563
    %597 = vmatprep.subr.mxu0 0.0
    %598 = vmatpush2.msra.mxu0 0.0
    %599 = vmatprep.subr.mxu0 0.0
    %600 = vmatpush2.msra.mxu0 0.0
    %601 = vmatprep.subr.mxu0 0.0
    %602 = vmatpush2.msra.mxu0 0.0
    %603 = vmatprep.subr.mxu0 0.0
    %604 = vmatpush2.msra.mxu0 0.0
    %605 = vmatprep.subr.mxu0 0.0
    %606 = vmatpush2.msra.mxu0 0.0
    %607 = vmatprep.subr.mxu0 0.0
    %608 = vmatpush2.msra.mxu0 0.0
    %609 = vmatprep.subr.mxu0 0.0
    %610 = vmatpush2.msra.mxu0 0.0
    %611 = vmatprep.subr.mxu0 0.0
    %612 = vmatpush2.msra.mxu0 0.0
    %613 = vmatprep.subr.mxu0 0.0
    %614 = vmatpush2.msra.mxu0 0.0
    %615 = vmatprep.subr.mxu0 0.0
    %616 = vmatpush2.msra.mxu0 0.0
    %617 = vmatprep.subr.mxu0 0.0
    %618 = vmatpush2.msra.mxu0 0.0
    %619 = vmatprep.subr.mxu0 0.0
    %620 = vmatpush2.msra.mxu0 0.0
    %621 = vmatprep.subr.mxu0 0.0
    %622 = vmatpush2.msra.mxu0 0.0
    %623 = vmatprep.subr.mxu0 0.0
    %624 = vmatpush2.msra.mxu0 0.0
    %625 = vmatprep.subr.mxu0 0.0
    %626 = vmatpush2.msra.mxu0 0.0
    %627 = vmatprep.subr.mxu0 0.0
    %628 = vmatpush2.msra.mxu0 0.0
    %629 = vmatprep.mubr.f32.mxu0 0.0
    %630 = vmatmul.mubr.f32.gmra.mxu0 %v558
    %v631 = vpop.f32.mrf.mxu0
    %v632 = vadd.f32 %v549, %v631
    %v633 = vpop.f32.mrf.mxu0
    %634 = vmatprep.mubr.f32.mxu0 0.0
    %635 = vmatmul.mubr.f32.gmra.mxu0 %v561
    %v636 = vpop.f32.mrf.mxu0
    %v637 = vadd.f32 %v554, %v636
    %v638 = vpop.f32.mrf.mxu0
    %639 = vdwg.mxu0
    %v640 = vlaneseq
    %v641 = vshrl.u32 %v640, 7
    %v642 = vsub.s32 0, %v641
    %v643 = vrot.slane %v45, %v642
    %v645 = vsel %vm183, %v632, 0
    %v648 = vsel %vm183, %v637, 0
    %650 = vmatprep.subr.mxu0 0.0
    %651 = vmatpush1.msra.mxu0 0.0
    %652 = vmatprep.subr.mxu0 0.0
    %653 = vmatpush1.msra.mxu0 0.0
    %654 = vmatprep.subr.mxu0 0.0
    %655 = vmatpush1.msra.mxu0 0.0
    %656 = vmatprep.subr.mxu0 0.0
    %657 = vmatpush1.msra.mxu0 0.0
    %658 = vmatprep.subr.mxu0 0.0
    %659 = vmatpush1.msra.mxu0 0.0
    %660 = vmatprep.subr.mxu0 0.0
    %661 = vmatpush1.msra.mxu0 0.0
    %662 = vmatprep.subr.mxu0 0.0
    %663 = vmatpush1.msra.mxu0 0.0
    %664 = vmatprep.subr.mxu0 0.0
    %665 = vmatpush1.msra.mxu0 0.0
    %666 = vmatprep.subr.mxu0 0.0
    %667 = vmatpush1.msra.mxu0 0.0
    %668 = vmatprep.subr.mxu0 0.0
    %669 = vmatpush1.msra.mxu0 0.0
    %670 = vmatprep.subr.mxu0 0.0
    %671 = vmatpush1.msra.mxu0 0.0
    %672 = vmatprep.subr.mxu0 0.0
    %673 = vmatpush1.msra.mxu0 0.0
    %674 = vmatprep.subr.mxu0 0.0
    %675 = vmatpush1.msra.mxu0 %v44
    %676 = vmatprep.subr.mxu0 0.0
    %677 = vmatpush1.msra.mxu0 %v43
    %678 = vmatprep.subr.mxu0 0.0
    %679 = vmatpush1.msra.mxu0 %v42
    %680 = vmatprep.subr.mxu0 0.0
    %681 = vmatpush1.msra.mxu0 %v41
    %682 = vmatprep.subr.mxu0 0.0
    %683 = vmatpush2.msra.mxu0 0.0
    %684 = vmatprep.subr.mxu0 0.0
    %685 = vmatpush2.msra.mxu0 0.0
    %686 = vmatprep.subr.mxu0 0.0
    %687 = vmatpush2.msra.mxu0 0.0
    %688 = vmatprep.subr.mxu0 0.0
    %689 = vmatpush2.msra.mxu0 0.0
    %690 = vmatprep.subr.mxu0 0.0
    %691 = vmatpush2.msra.mxu0 0.0
    %692 = vmatprep.subr.mxu0 0.0
    %693 = vmatpush2.msra.mxu0 0.0
    %694 = vmatprep.subr.mxu0 0.0
    %695 = vmatpush2.msra.mxu0 0.0
    %696 = vmatprep.subr.mxu0 0.0
    %697 = vmatpush2.msra.mxu0 0.0
    %698 = vmatprep.subr.mxu0 0.0
    %699 = vmatpush2.msra.mxu0 0.0
    %700 = vmatprep.subr.mxu0 0.0
    %701 = vmatpush2.msra.mxu0 0.0
    %702 = vmatprep.subr.mxu0 0.0
    %703 = vmatpush2.msra.mxu0 0.0
    %704 = vmatprep.subr.mxu0 0.0
    %705 = vmatpush2.msra.mxu0 0.0
    %706 = vmatprep.subr.mxu0 0.0
    %707 = vmatpush2.msra.mxu0 0.0
    %708 = vmatprep.subr.mxu0 0.0
    %709 = vmatpush2.msra.mxu0 0.0
    %710 = vmatprep.subr.mxu0 0.0
    %711 = vmatpush2.msra.mxu0 0.0
    %712 = vmatprep.subr.mxu0 0.0
    %713 = vmatpush2.msra.mxu0 0.0
    %714 = vmatprep.mubr.f32.mxu0 0.0
    %715 = vmatmul.mubr.f32.gmra.mxu0 %v645
    %v716 = vpop.f32.mrf.mxu0
    %v717 = vadd.f32 %v643, %v716
    %v718 = vpop.f32.mrf.mxu0
    %719 = vmatprep.mubr.f32.mxu0 0.0
    %720 = vmatmul.mubr.f32.gmra.mxu0 %v648
    %v721 = vpop.f32.mrf.mxu0
    %v722 = vadd.f32 %v643, %v721
    %v723 = vpop.f32.mrf.mxu0
    %724 = vdwg.mxu0
    %725 = vmatprep.subr.mxu0 0.0
    %726 = vmatpush1.msra.mxu0 0.0
    %727 = vmatprep.subr.mxu0 0.0
    %728 = vmatpush1.msra.mxu0 0.0
    %729 = vmatprep.subr.mxu0 0.0
    %730 = vmatpush1.msra.mxu0 0.0
    %731 = vmatprep.subr.mxu0 0.0
    %732 = vmatpush1.msra.mxu0 0.0
    %733 = vmatprep.subr.mxu0 0.0
    %734 = vmatpush1.msra.mxu0 0.0
    %735 = vmatprep.subr.mxu0 0.0
    %736 = vmatpush1.msra.mxu0 0.0
    %737 = vmatprep.subr.mxu0 0.0
    %738 = vmatpush1.msra.mxu0 0.0
    %739 = vmatprep.subr.mxu0 0.0
    %740 = vmatpush1.msra.mxu0 0.0
    %741 = vmatprep.subr.mxu0 0.0
    %742 = vmatpush1.msra.mxu0 0.0
    %743 = vmatprep.subr.mxu0 0.0
    %744 = vmatpush1.msra.mxu0 0.0
    %745 = vmatprep.subr.mxu0 0.0
    %746 = vmatpush1.msra.mxu0 0.0
    %747 = vmatprep.subr.mxu0 0.0
    %748 = vmatpush1.msra.mxu0 0.0
    %749 = vmatprep.subr.mxu0 0.0
    %750 = vmatpush1.msra.mxu0 %v49
    %751 = vmatprep.subr.mxu0 0.0
    %752 = vmatpush1.msra.mxu0 %v48
    %753 = vmatprep.subr.mxu0 0.0
    %754 = vmatpush1.msra.mxu0 %v47
    %755 = vmatprep.subr.mxu0 0.0
    %756 = vmatpush1.msra.mxu0 %v46
    %757 = vmatprep.subr.mxu0 0.0
    %758 = vmatpush2.msra.mxu0 0.0
    %759 = vmatprep.subr.mxu0 0.0
    %760 = vmatpush2.msra.mxu0 0.0
    %761 = vmatprep.subr.mxu0 0.0
    %762 = vmatpush2.msra.mxu0 0.0
    %763 = vmatprep.subr.mxu0 0.0
    %764 = vmatpush2.msra.mxu0 0.0
    %765 = vmatprep.subr.mxu0 0.0
    %766 = vmatpush2.msra.mxu0 0.0
    %767 = vmatprep.subr.mxu0 0.0
    %768 = vmatpush2.msra.mxu0 0.0
    %769 = vmatprep.subr.mxu0 0.0
    %770 = vmatpush2.msra.mxu0 0.0
    %771 = vmatprep.subr.mxu0 0.0
    %772 = vmatpush2.msra.mxu0 0.0
    %773 = vmatprep.subr.mxu0 0.0
    %774 = vmatpush2.msra.mxu0 0.0
    %775 = vmatprep.subr.mxu0 0.0
    %776 = vmatpush2.msra.mxu0 0.0
    %777 = vmatprep.subr.mxu0 0.0
    %778 = vmatpush2.msra.mxu0 0.0
    %779 = vmatprep.subr.mxu0 0.0
    %780 = vmatpush2.msra.mxu0 0.0
    %781 = vmatprep.subr.mxu0 0.0
    %782 = vmatpush2.msra.mxu0 0.0
    %783 = vmatprep.subr.mxu0 0.0
    %784 = vmatpush2.msra.mxu0 0.0
    %785 = vmatprep.subr.mxu0 0.0
    %786 = vmatpush2.msra.mxu0 0.0
    %787 = vmatprep.subr.mxu0 0.0
    %788 = vmatpush2.msra.mxu0 0.0
    %789 = vmatprep.mubr.f32.mxu0 0.0
    %790 = vmatmul.mubr.f32.gmra.mxu0 %v645
    %v791 = vpop.f32.mrf.mxu0
    %v792 = vadd.f32 0.0, %v791
    %v793 = vpop.f32.mrf.mxu0
    %794 = vmatprep.mubr.f32.mxu0 0.0
    %795 = vmatmul.mubr.f32.gmra.mxu0 %v648
    %v796 = vpop.f32.mrf.mxu0
    %v797 = vadd.f32 0.0, %v796
    %v798 = vpop.f32.mrf.mxu0
    %799 = vdwg.mxu0
    %802 = vrot.lane.b32.xlu0 %v717, 96
    %v803 = vpop.permute.xlu0 %802
    %804 = vrot.lane.b32.xlu0 %v722, 96
    %v805 = vpop.permute.xlu0 %804
    %v806 = vsel %vm83, %v717, 0
    %v808 = vsel %vm83, %v722, 0
    %v810 = vsel %vm83, %v803, 0
    %v812 = vsel %vm83, %v805, 0
    %814 = vmatprep.subr.mxu0 0.0
    %815 = vmatpush1.xpose.msra.mxu0 0.0
    %816 = vmatprep.subr.mxu0 0.0
    %817 = vmatpush1.xpose.msra.mxu0 0.0
    %818 = vmatprep.subr.mxu0 0.0
    %819 = vmatpush1.xpose.msra.mxu0 0.0
    %820 = vmatprep.subr.mxu0 0.0
    %821 = vmatpush1.xpose.msra.mxu0 0.0
    %822 = vmatprep.subr.mxu0 0.0
    %823 = vmatpush1.xpose.msra.mxu0 0.0
    %824 = vmatprep.subr.mxu0 0.0
    %825 = vmatpush1.xpose.msra.mxu0 0.0
    %826 = vmatprep.subr.mxu0 0.0
    %827 = vmatpush1.xpose.msra.mxu0 0.0
    %828 = vmatprep.subr.mxu0 0.0
    %829 = vmatpush1.xpose.msra.mxu0 0.0
    %830 = vmatprep.subr.mxu0 0.0
    %831 = vmatpush1.xpose.msra.mxu0 0.0
    %832 = vmatprep.subr.mxu0 0.0
    %833 = vmatpush1.xpose.msra.mxu0 0.0
    %834 = vmatprep.subr.mxu0 0.0
    %835 = vmatpush1.xpose.msra.mxu0 0.0
    %836 = vmatprep.subr.mxu0 0.0
    %837 = vmatpush1.xpose.msra.mxu0 0.0
    %838 = vmatprep.subr.mxu0 0.0
    %839 = vmatpush1.xpose.msra.mxu0 0.0
    %840 = vmatprep.subr.mxu0 0.0
    %841 = vmatpush1.xpose.msra.mxu0 0.0
    %842 = vmatprep.subr.mxu0 0.0
    %843 = vmatpush1.xpose.msra.mxu0 %v812
    %844 = vmatprep.subr.mxu0 0.0
    %845 = vmatpush1.xpose.msra.mxu0 %v810
    %846 = vmatprep.subr.mxu0 0.0
    %847 = vmatpush2.xpose.msra.mxu0 0.0
    %848 = vmatprep.subr.mxu0 0.0
    %849 = vmatpush2.xpose.msra.mxu0 0.0
    %850 = vmatprep.subr.mxu0 0.0
    %851 = vmatpush2.xpose.msra.mxu0 0.0
    %852 = vmatprep.subr.mxu0 0.0
    %853 = vmatpush2.xpose.msra.mxu0 0.0
    %854 = vmatprep.subr.mxu0 0.0
    %855 = vmatpush2.xpose.msra.mxu0 0.0
    %856 = vmatprep.subr.mxu0 0.0
    %857 = vmatpush2.xpose.msra.mxu0 0.0
    %858 = vmatprep.subr.mxu0 0.0
    %859 = vmatpush2.xpose.msra.mxu0 0.0
    %860 = vmatprep.subr.mxu0 0.0
    %861 = vmatpush2.xpose.msra.mxu0 0.0
    %862 = vmatprep.subr.mxu0 0.0
    %863 = vmatpush2.xpose.msra.mxu0 0.0
    %864 = vmatprep.subr.mxu0 0.0
    %865 = vmatpush2.xpose.msra.mxu0 0.0
    %866 = vmatprep.subr.mxu0 0.0
    %867 = vmatpush2.xpose.msra.mxu0 0.0
    %868 = vmatprep.subr.mxu0 0.0
    %869 = vmatpush2.xpose.msra.mxu0 0.0
    %870 = vmatprep.subr.mxu0 0.0
    %871 = vmatpush2.xpose.msra.mxu0 0.0
    %872 = vmatprep.subr.mxu0 0.0
    %873 = vmatpush2.xpose.msra.mxu0 0.0
    %874 = vmatprep.subr.mxu0 0.0
    %875 = vmatpush2.xpose.msra.mxu0 0.0
    %876 = vmatprep.subr.mxu0 0.0
    %877 = vmatpush2.xpose.msra.mxu0 0.0
    %878 = vmatprep.mubr.f32.mxu0 0.0
    %879 = vmatmul.mubr.f32.gmra.mxu0 %v806
    %v880 = vpop.f32.mrf.mxu0
    %v881 = vadd.f32 0.0, %v880
    %v882 = vpop.f32.mrf.mxu0
    %883 = vmatprep.mubr.f32.mxu0 0.0
    %884 = vmatmul.mubr.f32.gmra.mxu0 %v808
    %v885 = vpop.f32.mrf.mxu0
    %v886 = vadd.f32 0.0, %v885
    %v887 = vpop.f32.mrf.mxu0
    %888 = vdwg.mxu0
    %vm889 = vcmask 130048
    %v890 = vsel %vm889, %v881, -inf
    %891 = vmax.xlane.f32.xlu0 %v890
    %v892 = vpop.xlane.xlu0 %891
    %v893 = vsel %vm889, %v886, -inf
    %894 = vmax.xlane.f32.xlu0 %v893
    %v895 = vpop.xlane.xlu0 %894
    %v896 = vsub.f32 %v881, %v892
    %v897 = vsub.f32 %v886, %v895
    %v898 = vmul.f32 %v896, 1.442695
    %v899 = vpow.pop %v898
    %v900 = vmul.f32 %v897, 1.442695
    %v901 = vpow.pop %v900
    %v902 = vmul.f32 %v899, %v74
    %v903 = vmul.f32 %v901, %v75
    %v904 = vsel %vm889, %v902, 0.0
    %905 = vadd.xlane.f32.xlu0 %v904
    %v906 = vpop.xlane.xlu0 %905
    %v907 = vsel %vm889, %v903, 0.0
    %908 = vadd.xlane.f32.xlu0 %v907
    %v909 = vpop.xlane.xlu0 %908
    %v910 = vrcp.pop %v906
    %v911 = vrcp.pop %v909
    %v912 = vmul.f32 %v902, %v910
    %v913 = vmul.f32 %v903, %v911
    %914 = vrot.lane.b32.xlu0 %v717, 120
    %v915 = vpop.permute.xlu0 %914
    %916 = vrot.lane.b32.xlu0 %v722, 120
    %v917 = vpop.permute.xlu0 %916
    %918 = vrot.lane.b32.xlu0 %v717, 88
    %v919 = vpop.permute.xlu0 %918
    %920 = vrot.lane.b32.xlu0 %v722, 88
    %v921 = vpop.permute.xlu0 %920
    %v922 = vsel %vm83, %v915, 0
    %v924 = vsel %vm83, %v917, 0
    %v926 = vsel %vm83, %v919, 0
    %v928 = vsel %vm83, %v921, 0
    %930 = vmatprep.subr.mxu0 0.0
    %931 = vmatpush1.xpose.msra.mxu0 0.0
    %932 = vmatprep.subr.mxu0 0.0
    %933 = vmatpush1.xpose.msra.mxu0 0.0
    %934 = vmatprep.subr.mxu0 0.0
    %935 = vmatpush1.xpose.msra.mxu0 0.0
    %936 = vmatprep.subr.mxu0 0.0
    %937 = vmatpush1.xpose.msra.mxu0 0.0
    %938 = vmatprep.subr.mxu0 0.0
    %939 = vmatpush1.xpose.msra.mxu0 0.0
    %940 = vmatprep.subr.mxu0 0.0
    %941 = vmatpush1.xpose.msra.mxu0 0.0
    %942 = vmatprep.subr.mxu0 0.0
    %943 = vmatpush1.xpose.msra.mxu0 0.0
    %944 = vmatprep.subr.mxu0 0.0
    %945 = vmatpush1.xpose.msra.mxu0 0.0
    %946 = vmatprep.subr.mxu0 0.0
    %947 = vmatpush1.xpose.msra.mxu0 0.0
    %948 = vmatprep.subr.mxu0 0.0
    %949 = vmatpush1.xpose.msra.mxu0 0.0
    %950 = vmatprep.subr.mxu0 0.0
    %951 = vmatpush1.xpose.msra.mxu0 0.0
    %952 = vmatprep.subr.mxu0 0.0
    %953 = vmatpush1.xpose.msra.mxu0 0.0
    %954 = vmatprep.subr.mxu0 0.0
    %955 = vmatpush1.xpose.msra.mxu0 0.0
    %956 = vmatprep.subr.mxu0 0.0
    %957 = vmatpush1.xpose.msra.mxu0 0.0
    %958 = vmatprep.subr.mxu0 0.0
    %959 = vmatpush1.xpose.msra.mxu0 %v928
    %960 = vmatprep.subr.mxu0 0.0
    %961 = vmatpush1.xpose.msra.mxu0 %v926
    %962 = vmatprep.subr.mxu0 0.0
    %963 = vmatpush2.xpose.msra.mxu0 0.0
    %964 = vmatprep.subr.mxu0 0.0
    %965 = vmatpush2.xpose.msra.mxu0 0.0
    %966 = vmatprep.subr.mxu0 0.0
    %967 = vmatpush2.xpose.msra.mxu0 0.0
    %968 = vmatprep.subr.mxu0 0.0
    %969 = vmatpush2.xpose.msra.mxu0 0.0
    %970 = vmatprep.subr.mxu0 0.0
    %971 = vmatpush2.xpose.msra.mxu0 0.0
    %972 = vmatprep.subr.mxu0 0.0
    %973 = vmatpush2.xpose.msra.mxu0 0.0
    %974 = vmatprep.subr.mxu0 0.0
    %975 = vmatpush2.xpose.msra.mxu0 0.0
    %976 = vmatprep.subr.mxu0 0.0
    %977 = vmatpush2.xpose.msra.mxu0 0.0
    %978 = vmatprep.subr.mxu0 0.0
    %979 = vmatpush2.xpose.msra.mxu0 0.0
    %980 = vmatprep.subr.mxu0 0.0
    %981 = vmatpush2.xpose.msra.mxu0 0.0
    %982 = vmatprep.subr.mxu0 0.0
    %983 = vmatpush2.xpose.msra.mxu0 0.0
    %984 = vmatprep.subr.mxu0 0.0
    %985 = vmatpush2.xpose.msra.mxu0 0.0
    %986 = vmatprep.subr.mxu0 0.0
    %987 = vmatpush2.xpose.msra.mxu0 0.0
    %988 = vmatprep.subr.mxu0 0.0
    %989 = vmatpush2.xpose.msra.mxu0 0.0
    %990 = vmatprep.subr.mxu0 0.0
    %991 = vmatpush2.xpose.msra.mxu0 0.0
    %992 = vmatprep.subr.mxu0 0.0
    %993 = vmatpush2.xpose.msra.mxu0 0.0
    %994 = vmatprep.mubr.f32.mxu0 0.0
    %995 = vmatmul.mubr.f32.gmra.mxu0 %v922
    %v996 = vpop.f32.mrf.mxu0
    %v997 = vadd.f32 0.0, %v996
    %v998 = vpop.f32.mrf.mxu0
    %999 = vmatprep.mubr.f32.mxu0 0.0
    %1000 = vmatmul.mubr.f32.gmra.mxu0 %v924
    %v1001 = vpop.f32.mrf.mxu0
    %v1002 = vadd.f32 0.0, %v1001
    %v1003 = vpop.f32.mrf.mxu0
    %1004 = vdwg.mxu0
    %v1005 = vsel %vm889, %v997, -inf
    %1006 = vmax.xlane.f32.xlu0 %v1005
    %v1007 = vpop.xlane.xlu0 %1006
    %v1008 = vsel %vm889, %v1002, -inf
    %1009 = vmax.xlane.f32.xlu0 %v1008
    %v1010 = vpop.xlane.xlu0 %1009
    %v1011 = vsub.f32 %v997, %v1007
    %v1012 = vsub.f32 %v1002, %v1010
    %v1013 = vmul.f32 %v1011, 1.442695
    %v1014 = vpow.pop %v1013
    %v1015 = vmul.f32 %v1012, 1.442695
    %v1016 = vpow.pop %v1015
    %v1017 = vmul.f32 %v1014, %v74
    %v1018 = vmul.f32 %v1016, %v75
    %v1019 = vsel %vm889, %v1017, 0.0
    %1020 = vadd.xlane.f32.xlu0 %v1019
    %v1021 = vpop.xlane.xlu0 %1020
    %v1022 = vsel %vm889, %v1018, 0.0
    %1023 = vadd.xlane.f32.xlu0 %v1022
    %v1024 = vpop.xlane.xlu0 %1023
    %v1025 = vrcp.pop %v1021
    %v1026 = vrcp.pop %v1024
    %v1027 = vmul.f32 %v1017, %v1025
    %v1028 = vmul.f32 %v1018, %v1026
    %1031 = vrot.lane.b32.xlu0 %v792, 96
    %v1032 = vpop.permute.xlu0 %1031
    %1033 = vrot.lane.b32.xlu0 %v797, 96
    %v1034 = vpop.permute.xlu0 %1033
    %v1038 = vsel %vm889, %v1027, 0
    %v1041 = vsel %vm889, %v1028, 0
    %1043 = vmatprep.subr.mxu0 0.0
    %1044 = vmatpush1.msra.mxu0 0.0
    %1045 = vmatprep.subr.mxu0 0.0
    %1046 = vmatpush1.msra.mxu0 0.0
    %1047 = vmatprep.subr.mxu0 0.0
    %1048 = vmatpush1.msra.mxu0 0.0
    %1049 = vmatprep.subr.mxu0 0.0
    %1050 = vmatpush1.msra.mxu0 0.0
    %1051 = vmatprep.subr.mxu0 0.0
    %1052 = vmatpush1.msra.mxu0 0.0
    %1053 = vmatprep.subr.mxu0 0.0
    %1054 = vmatpush1.msra.mxu0 0.0
    %1055 = vmatprep.subr.mxu0 0.0
    %1056 = vmatpush1.msra.mxu0 0.0
    %1057 = vmatprep.subr.mxu0 0.0
    %1058 = vmatpush1.msra.mxu0 0.0
    %1059 = vmatprep.subr.mxu0 0.0
    %1060 = vmatpush1.msra.mxu0 0.0
    %1061 = vmatprep.subr.mxu0 0.0
    %1062 = vmatpush1.msra.mxu0 0.0
    %1063 = vmatprep.subr.mxu0 0.0
    %1064 = vmatpush1.msra.mxu0 0.0
    %1065 = vmatprep.subr.mxu0 0.0
    %1066 = vmatpush1.msra.mxu0 0.0
    %1067 = vmatprep.subr.mxu0 0.0
    %1068 = vmatpush1.msra.mxu0 0.0
    %1069 = vmatprep.subr.mxu0 0.0
    %1070 = vmatpush1.msra.mxu0 0.0
    %1071 = vmatprep.subr.mxu0 0.0
    %1072 = vmatpush1.msra.mxu0 %v1034
    %1073 = vmatprep.subr.mxu0 0.0
    %1074 = vmatpush1.msra.mxu0 %v1032
    %1075 = vmatprep.subr.mxu0 0.0
    %1076 = vmatpush2.msra.mxu0 0.0
    %1077 = vmatprep.subr.mxu0 0.0
    %1078 = vmatpush2.msra.mxu0 0.0
    %1079 = vmatprep.subr.mxu0 0.0
    %1080 = vmatpush2.msra.mxu0 0.0
    %1081 = vmatprep.subr.mxu0 0.0
    %1082 = vmatpush2.msra.mxu0 0.0
    %1083 = vmatprep.subr.mxu0 0.0
    %1084 = vmatpush2.msra.mxu0 0.0
    %1085 = vmatprep.subr.mxu0 0.0
    %1086 = vmatpush2.msra.mxu0 0.0
    %1087 = vmatprep.subr.mxu0 0.0
    %1088 = vmatpush2.msra.mxu0 0.0
    %1089 = vmatprep.subr.mxu0 0.0
    %1090 = vmatpush2.msra.mxu0 0.0
    %1091 = vmatprep.subr.mxu0 0.0
    %1092 = vmatpush2.msra.mxu0 0.0
    %1093 = vmatprep.subr.mxu0 0.0
    %1094 = vmatpush2.msra.mxu0 0.0
    %1095 = vmatprep.subr.mxu0 0.0
    %1096 = vmatpush2.msra.mxu0 0.0
    %1097 = vmatprep.subr.mxu0 0.0
    %1098 = vmatpush2.msra.mxu0 0.0
    %1099 = vmatprep.subr.mxu0 0.0
    %1100 = vmatpush2.msra.mxu0 0.0
    %1101 = vmatprep.subr.mxu0 0.0
    %1102 = vmatpush2.msra.mxu0 0.0
    %1103 = vmatprep.subr.mxu0 0.0
    %1104 = vmatpush2.msra.mxu0 0.0
    %1105 = vmatprep.subr.mxu0 0.0
    %1106 = vmatpush2.msra.mxu0 0.0
    %1107 = vmatprep.mubr.f32.mxu0 0.0
    %1108 = vmatmul.mubr.f32.gmra.mxu0 %v1038
    %v1109 = vpop.f32.mrf.mxu0
    %v1110 = vadd.f32 0.0, %v1109
    %v1111 = vpop.f32.mrf.mxu0
    %1112 = vmatprep.mubr.f32.mxu0 0.0
    %1113 = vmatmul.mubr.f32.gmra.mxu0 %v1041
    %v1114 = vpop.f32.mrf.mxu0
    %v1115 = vadd.f32 0.0, %v1114
    %v1116 = vpop.f32.mrf.mxu0
    %1117 = vdwg.mxu0
    %v1119 = vsel %vm889, %v912, 0
    %v1122 = vsel %vm889, %v913, 0
    %1124 = vmatprep.subr.mxu0 0.0
    %1125 = vmatpush1.msra.mxu0 0.0
    %1126 = vmatprep.subr.mxu0 0.0
    %1127 = vmatpush1.msra.mxu0 0.0
    %1128 = vmatprep.subr.mxu0 0.0
    %1129 = vmatpush1.msra.mxu0 0.0
    %1130 = vmatprep.subr.mxu0 0.0
    %1131 = vmatpush1.msra.mxu0 0.0
    %1132 = vmatprep.subr.mxu0 0.0
    %1133 = vmatpush1.msra.mxu0 0.0
    %1134 = vmatprep.subr.mxu0 0.0
    %1135 = vmatpush1.msra.mxu0 0.0
    %1136 = vmatprep.subr.mxu0 0.0
    %1137 = vmatpush1.msra.mxu0 0.0
    %1138 = vmatprep.subr.mxu0 0.0
    %1139 = vmatpush1.msra.mxu0 0.0
    %1140 = vmatprep.subr.mxu0 0.0
    %1141 = vmatpush1.msra.mxu0 0.0
    %1142 = vmatprep.subr.mxu0 0.0
    %1143 = vmatpush1.msra.mxu0 0.0
    %1144 = vmatprep.subr.mxu0 0.0
    %1145 = vmatpush1.msra.mxu0 0.0
    %1146 = vmatprep.subr.mxu0 0.0
    %1147 = vmatpush1.msra.mxu0 0.0
    %1148 = vmatprep.subr.mxu0 0.0
    %1149 = vmatpush1.msra.mxu0 0.0
    %1150 = vmatprep.subr.mxu0 0.0
    %1151 = vmatpush1.msra.mxu0 0.0
    %1152 = vmatprep.subr.mxu0 0.0
    %1153 = vmatpush1.msra.mxu0 %v797
    %1154 = vmatprep.subr.mxu0 0.0
    %1155 = vmatpush1.msra.mxu0 %v792
    %1156 = vmatprep.subr.mxu0 0.0
    %1157 = vmatpush2.msra.mxu0 0.0
    %1158 = vmatprep.subr.mxu0 0.0
    %1159 = vmatpush2.msra.mxu0 0.0
    %1160 = vmatprep.subr.mxu0 0.0
    %1161 = vmatpush2.msra.mxu0 0.0
    %1162 = vmatprep.subr.mxu0 0.0
    %1163 = vmatpush2.msra.mxu0 0.0
    %1164 = vmatprep.subr.mxu0 0.0
    %1165 = vmatpush2.msra.mxu0 0.0
    %1166 = vmatprep.subr.mxu0 0.0
    %1167 = vmatpush2.msra.mxu0 0.0
    %1168 = vmatprep.subr.mxu0 0.0
    %1169 = vmatpush2.msra.mxu0 0.0
    %1170 = vmatprep.subr.mxu0 0.0
    %1171 = vmatpush2.msra.mxu0 0.0
    %1172 = vmatprep.subr.mxu0 0.0
    %1173 = vmatpush2.msra.mxu0 0.0
    %1174 = vmatprep.subr.mxu0 0.0
    %1175 = vmatpush2.msra.mxu0 0.0
    %1176 = vmatprep.subr.mxu0 0.0
    %1177 = vmatpush2.msra.mxu0 0.0
    %1178 = vmatprep.subr.mxu0 0.0
    %1179 = vmatpush2.msra.mxu0 0.0
    %1180 = vmatprep.subr.mxu0 0.0
    %1181 = vmatpush2.msra.mxu0 0.0
    %1182 = vmatprep.subr.mxu0 0.0
    %1183 = vmatpush2.msra.mxu0 0.0
    %1184 = vmatprep.subr.mxu0 0.0
    %1185 = vmatpush2.msra.mxu0 0.0
    %1186 = vmatprep.subr.mxu0 0.0
    %1187 = vmatpush2.msra.mxu0 0.0
    %1188 = vmatprep.mubr.f32.mxu0 0.0
    %1189 = vmatmul.mubr.f32.gmra.mxu0 %v1119
    %v1190 = vpop.f32.mrf.mxu0
    %v1191 = vadd.f32 %v1110, %v1190
    %v1192 = vpop.f32.mrf.mxu0
    %1193 = vmatprep.mubr.f32.mxu0 0.0
    %1194 = vmatmul.mubr.f32.gmra.mxu0 %v1122
    %v1195 = vpop.f32.mrf.mxu0
    %v1196 = vadd.f32 %v1115, %v1195
    %v1197 = vpop.f32.mrf.mxu0
    %1198 = vdwg.mxu0
    %1199 = vrot.lane.b32.xlu0 %v717, 112
    %v1200 = vpop.permute.xlu0 %1199
    %1201 = vrot.lane.b32.xlu0 %v722, 112
    %v1202 = vpop.permute.xlu0 %1201
    %1203 = vrot.lane.b32.xlu0 %v717, 80
    %v1204 = vpop.permute.xlu0 %1203
    %1205 = vrot.lane.b32.xlu0 %v722, 80
    %v1206 = vpop.permute.xlu0 %1205
    %v1207 = vsel %vm83, %v1200, 0
    %v1209 = vsel %vm83, %v1202, 0
    %v1211 = vsel %vm83, %v1204, 0
    %v1213 = vsel %vm83, %v1206, 0
    %1215 = vmatprep.subr.mxu0 0.0
    %1216 = vmatpush1.xpose.msra.mxu0 0.0
    %1217 = vmatprep.subr.mxu0 0.0
    %1218 = vmatpush1.xpose.msra.mxu0 0.0
    %1219 = vmatprep.subr.mxu0 0.0
    %1220 = vmatpush1.xpose.msra.mxu0 0.0
    %1221 = vmatprep.subr.mxu0 0.0
    %1222 = vmatpush1.xpose.msra.mxu0 0.0
    %1223 = vmatprep.subr.mxu0 0.0
    %1224 = vmatpush1.xpose.msra.mxu0 0.0
    %1225 = vmatprep.subr.mxu0 0.0
    %1226 = vmatpush1.xpose.msra.mxu0 0.0
    %1227 = vmatprep.subr.mxu0 0.0
    %1228 = vmatpush1.xpose.msra.mxu0 0.0
    %1229 = vmatprep.subr.mxu0 0.0
    %1230 = vmatpush1.xpose.msra.mxu0 0.0
    %1231 = vmatprep.subr.mxu0 0.0
    %1232 = vmatpush1.xpose.msra.mxu0 0.0
    %1233 = vmatprep.subr.mxu0 0.0
    %1234 = vmatpush1.xpose.msra.mxu0 0.0
    %1235 = vmatprep.subr.mxu0 0.0
    %1236 = vmatpush1.xpose.msra.mxu0 0.0
    %1237 = vmatprep.subr.mxu0 0.0
    %1238 = vmatpush1.xpose.msra.mxu0 0.0
    %1239 = vmatprep.subr.mxu0 0.0
    %1240 = vmatpush1.xpose.msra.mxu0 0.0
    %1241 = vmatprep.subr.mxu0 0.0
    %1242 = vmatpush1.xpose.msra.mxu0 0.0
    %1243 = vmatprep.subr.mxu0 0.0
    %1244 = vmatpush1.xpose.msra.mxu0 %v1213
    %1245 = vmatprep.subr.mxu0 0.0
    %1246 = vmatpush1.xpose.msra.mxu0 %v1211
    %1247 = vmatprep.subr.mxu0 0.0
    %1248 = vmatpush2.xpose.msra.mxu0 0.0
    %1249 = vmatprep.subr.mxu0 0.0
    %1250 = vmatpush2.xpose.msra.mxu0 0.0
    %1251 = vmatprep.subr.mxu0 0.0
    %1252 = vmatpush2.xpose.msra.mxu0 0.0
    %1253 = vmatprep.subr.mxu0 0.0
    %1254 = vmatpush2.xpose.msra.mxu0 0.0
    %1255 = vmatprep.subr.mxu0 0.0
    %1256 = vmatpush2.xpose.msra.mxu0 0.0
    %1257 = vmatprep.subr.mxu0 0.0
    %1258 = vmatpush2.xpose.msra.mxu0 0.0
    %1259 = vmatprep.subr.mxu0 0.0
    %1260 = vmatpush2.xpose.msra.mxu0 0.0
    %1261 = vmatprep.subr.mxu0 0.0
    %1262 = vmatpush2.xpose.msra.mxu0 0.0
    %1263 = vmatprep.subr.mxu0 0.0
    %1264 = vmatpush2.xpose.msra.mxu0 0.0
    %1265 = vmatprep.subr.mxu0 0.0
    %1266 = vmatpush2.xpose.msra.mxu0 0.0
    %1267 = vmatprep.subr.mxu0 0.0
    %1268 = vmatpush2.xpose.msra.mxu0 0.0
    %1269 = vmatprep.subr.mxu0 0.0
    %1270 = vmatpush2.xpose.msra.mxu0 0.0
    %1271 = vmatprep.subr.mxu0 0.0
    %1272 = vmatpush2.xpose.msra.mxu0 0.0
    %1273 = vmatprep.subr.mxu0 0.0
    %1274 = vmatpush2.xpose.msra.mxu0 0.0
    %1275 = vmatprep.subr.mxu0 0.0
    %1276 = vmatpush2.xpose.msra.mxu0 0.0
    %1277 = vmatprep.subr.mxu0 0.0
    %1278 = vmatpush2.xpose.msra.mxu0 0.0
    %1279 = vmatprep.mubr.f32.mxu0 0.0
    %1280 = vmatmul.mubr.f32.gmra.mxu0 %v1207
    %v1281 = vpop.f32.mrf.mxu0
    %v1282 = vadd.f32 0.0, %v1281
    %v1283 = vpop.f32.mrf.mxu0
    %1284 = vmatprep.mubr.f32.mxu0 0.0
    %1285 = vmatmul.mubr.f32.gmra.mxu0 %v1209
    %v1286 = vpop.f32.mrf.mxu0
    %v1287 = vadd.f32 0.0, %v1286
    %v1288 = vpop.f32.mrf.mxu0
    %1289 = vdwg.mxu0
    %v1290 = vsel %vm889, %v1282, -inf
    %1291 = vmax.xlane.f32.xlu0 %v1290
    %v1292 = vpop.xlane.xlu0 %1291
    %v1293 = vsel %vm889, %v1287, -inf
    %1294 = vmax.xlane.f32.xlu0 %v1293
    %v1295 = vpop.xlane.xlu0 %1294
    %v1296 = vsub.f32 %v1282, %v1292
    %v1297 = vsub.f32 %v1287, %v1295
    %v1298 = vmul.f32 %v1296, 1.442695
    %v1299 = vpow.pop %v1298
    %v1300 = vmul.f32 %v1297, 1.442695
    %v1301 = vpow.pop %v1300
    %v1302 = vmul.f32 %v1299, %v74
    %v1303 = vmul.f32 %v1301, %v75
    %v1304 = vsel %vm889, %v1302, 0.0
    %1305 = vadd.xlane.f32.xlu0 %v1304
    %v1306 = vpop.xlane.xlu0 %1305
    %v1307 = vsel %vm889, %v1303, 0.0
    %1308 = vadd.xlane.f32.xlu0 %v1307
    %v1309 = vpop.xlane.xlu0 %1308
    %v1310 = vrcp.pop %v1306
    %v1311 = vrcp.pop %v1309
    %v1312 = vmul.f32 %v1302, %v1310
    %v1313 = vmul.f32 %v1303, %v1311
    %1314 = vrot.lane.b32.xlu0 %v792, 64
    %v1315 = vpop.permute.xlu0 %1314
    %1316 = vrot.lane.b32.xlu0 %v797, 64
    %v1317 = vpop.permute.xlu0 %1316
    %v1321 = vsel %vm889, %v1312, 0
    %v1324 = vsel %vm889, %v1313, 0
    %1326 = vmatprep.subr.mxu0 0.0
    %1327 = vmatpush1.msra.mxu0 0.0
    %1328 = vmatprep.subr.mxu0 0.0
    %1329 = vmatpush1.msra.mxu0 0.0
    %1330 = vmatprep.subr.mxu0 0.0
    %1331 = vmatpush1.msra.mxu0 0.0
    %1332 = vmatprep.subr.mxu0 0.0
    %1333 = vmatpush1.msra.mxu0 0.0
    %1334 = vmatprep.subr.mxu0 0.0
    %1335 = vmatpush1.msra.mxu0 0.0
    %1336 = vmatprep.subr.mxu0 0.0
    %1337 = vmatpush1.msra.mxu0 0.0
    %1338 = vmatprep.subr.mxu0 0.0
    %1339 = vmatpush1.msra.mxu0 0.0
    %1340 = vmatprep.subr.mxu0 0.0
    %1341 = vmatpush1.msra.mxu0 0.0
    %1342 = vmatprep.subr.mxu0 0.0
    %1343 = vmatpush1.msra.mxu0 0.0
    %1344 = vmatprep.subr.mxu0 0.0
    %1345 = vmatpush1.msra.mxu0 0.0
    %1346 = vmatprep.subr.mxu0 0.0
    %1347 = vmatpush1.msra.mxu0 0.0
    %1348 = vmatprep.subr.mxu0 0.0
    %1349 = vmatpush1.msra.mxu0 0.0
    %1350 = vmatprep.subr.mxu0 0.0
    %1351 = vmatpush1.msra.mxu0 0.0
    %1352 = vmatprep.subr.mxu0 0.0
    %1353 = vmatpush1.msra.mxu0 0.0
    %1354 = vmatprep.subr.mxu0 0.0
    %1355 = vmatpush1.msra.mxu0 %v1317
    %1356 = vmatprep.subr.mxu0 0.0
    %1357 = vmatpush1.msra.mxu0 %v1315
    %1358 = vmatprep.subr.mxu0 0.0
    %1359 = vmatpush2.msra.mxu0 0.0
    %1360 = vmatprep.subr.mxu0 0.0
    %1361 = vmatpush2.msra.mxu0 0.0
    %1362 = vmatprep.subr.mxu0 0.0
    %1363 = vmatpush2.msra.mxu0 0.0
    %1364 = vmatprep.subr.mxu0 0.0
    %1365 = vmatpush2.msra.mxu0 0.0
    %1366 = vmatprep.subr.mxu0 0.0
    %1367 = vmatpush2.msra.mxu0 0.0
    %1368 = vmatprep.subr.mxu0 0.0
    %1369 = vmatpush2.msra.mxu0 0.0
    %1370 = vmatprep.subr.mxu0 0.0
    %1371 = vmatpush2.msra.mxu0 0.0
    %1372 = vmatprep.subr.mxu0 0.0
    %1373 = vmatpush2.msra.mxu0 0.0
    %1374 = vmatprep.subr.mxu0 0.0
    %1375 = vmatpush2.msra.mxu0 0.0
    %1376 = vmatprep.subr.mxu0 0.0
    %1377 = vmatpush2.msra.mxu0 0.0
    %1378 = vmatprep.subr.mxu0 0.0
    %1379 = vmatpush2.msra.mxu0 0.0
    %1380 = vmatprep.subr.mxu0 0.0
    %1381 = vmatpush2.msra.mxu0 0.0
    %1382 = vmatprep.subr.mxu0 0.0
    %1383 = vmatpush2.msra.mxu0 0.0
    %1384 = vmatprep.subr.mxu0 0.0
    %1385 = vmatpush2.msra.mxu0 0.0
    %1386 = vmatprep.subr.mxu0 0.0
    %1387 = vmatpush2.msra.mxu0 0.0
    %1388 = vmatprep.subr.mxu0 0.0
    %1389 = vmatpush2.msra.mxu0 0.0
    %1390 = vmatprep.mubr.f32.mxu0 0.0
    %1391 = vmatmul.mubr.f32.gmra.mxu0 %v1321
    %v1392 = vpop.f32.mrf.mxu0
    %v1393 = vadd.f32 0.0, %v1392
    %v1394 = vpop.f32.mrf.mxu0
    %1395 = vmatprep.mubr.f32.mxu0 0.0
    %1396 = vmatmul.mubr.f32.gmra.mxu0 %v1324
    %v1397 = vpop.f32.mrf.mxu0
    %v1398 = vadd.f32 0.0, %v1397
    %v1399 = vpop.f32.mrf.mxu0
    %1400 = vdwg.mxu0
    %v1401 = vadd.f32 %v1191, %v1393
    %v1402 = vadd.f32 %v1196, %v1398
    %1403 = vrot.lane.b32.xlu0 %v717, 104
    %v1404 = vpop.permute.xlu0 %1403
    %1405 = vrot.lane.b32.xlu0 %v722, 104
    %v1406 = vpop.permute.xlu0 %1405
    %1407 = vrot.lane.b32.xlu0 %v717, 72
    %v1408 = vpop.permute.xlu0 %1407
    %1409 = vrot.lane.b32.xlu0 %v722, 72
    %v1410 = vpop.permute.xlu0 %1409
    %v1411 = vsel %vm83, %v1404, 0
    %v1413 = vsel %vm83, %v1406, 0
    %v1415 = vsel %vm83, %v1408, 0
    %v1417 = vsel %vm83, %v1410, 0
    %1419 = vmatprep.subr.mxu0 0.0
    %1420 = vmatpush1.xpose.msra.mxu0 0.0
    %1421 = vmatprep.subr.mxu0 0.0
    %1422 = vmatpush1.xpose.msra.mxu0 0.0
    %1423 = vmatprep.subr.mxu0 0.0
    %1424 = vmatpush1.xpose.msra.mxu0 0.0
    %1425 = vmatprep.subr.mxu0 0.0
    %1426 = vmatpush1.xpose.msra.mxu0 0.0
    %1427 = vmatprep.subr.mxu0 0.0
    %1428 = vmatpush1.xpose.msra.mxu0 0.0
    %1429 = vmatprep.subr.mxu0 0.0
    %1430 = vmatpush1.xpose.msra.mxu0 0.0
    %1431 = vmatprep.subr.mxu0 0.0
    %1432 = vmatpush1.xpose.msra.mxu0 0.0
    %1433 = vmatprep.subr.mxu0 0.0
    %1434 = vmatpush1.xpose.msra.mxu0 0.0
    %1435 = vmatprep.subr.mxu0 0.0
    %1436 = vmatpush1.xpose.msra.mxu0 0.0
    %1437 = vmatprep.subr.mxu0 0.0
    %1438 = vmatpush1.xpose.msra.mxu0 0.0
    %1439 = vmatprep.subr.mxu0 0.0
    %1440 = vmatpush1.xpose.msra.mxu0 0.0
    %1441 = vmatprep.subr.mxu0 0.0
    %1442 = vmatpush1.xpose.msra.mxu0 0.0
    %1443 = vmatprep.subr.mxu0 0.0
    %1444 = vmatpush1.xpose.msra.mxu0 0.0
    %1445 = vmatprep.subr.mxu0 0.0
    %1446 = vmatpush1.xpose.msra.mxu0 0.0
    %1447 = vmatprep.subr.mxu0 0.0
    %1448 = vmatpush1.xpose.msra.mxu0 %v1417
    %1449 = vmatprep.subr.mxu0 0.0
    %1450 = vmatpush1.xpose.msra.mxu0 %v1415
    %1451 = vmatprep.subr.mxu0 0.0
    %1452 = vmatpush2.xpose.msra.mxu0 0.0
    %1453 = vmatprep.subr.mxu0 0.0
    %1454 = vmatpush2.xpose.msra.mxu0 0.0
    %1455 = vmatprep.subr.mxu0 0.0
    %1456 = vmatpush2.xpose.msra.mxu0 0.0
    %1457 = vmatprep.subr.mxu0 0.0
    %1458 = vmatpush2.xpose.msra.mxu0 0.0
    %1459 = vmatprep.subr.mxu0 0.0
    %1460 = vmatpush2.xpose.msra.mxu0 0.0
    %1461 = vmatprep.subr.mxu0 0.0
    %1462 = vmatpush2.xpose.msra.mxu0 0.0
    %1463 = vmatprep.subr.mxu0 0.0
    %1464 = vmatpush2.xpose.msra.mxu0 0.0
    %1465 = vmatprep.subr.mxu0 0.0
    %1466 = vmatpush2.xpose.msra.mxu0 0.0
    %1467 = vmatprep.subr.mxu0 0.0
    %1468 = vmatpush2.xpose.msra.mxu0 0.0
    %1469 = vmatprep.subr.mxu0 0.0
    %1470 = vmatpush2.xpose.msra.mxu0 0.0
    %1471 = vmatprep.subr.mxu0 0.0
    %1472 = vmatpush2.xpose.msra.mxu0 0.0
    %1473 = vmatprep.subr.mxu0 0.0
    %1474 = vmatpush2.xpose.msra.mxu0 0.0
    %1475 = vmatprep.subr.mxu0 0.0
    %1476 = vmatpush2.xpose.msra.mxu0 0.0
    %1477 = vmatprep.subr.mxu0 0.0
    %1478 = vmatpush2.xpose.msra.mxu0 0.0
    %1479 = vmatprep.subr.mxu0 0.0
    %1480 = vmatpush2.xpose.msra.mxu0 0.0
    %1481 = vmatprep.subr.mxu0 0.0
    %1482 = vmatpush2.xpose.msra.mxu0 0.0
    %1483 = vmatprep.mubr.f32.mxu0 0.0
    %1484 = vmatmul.mubr.f32.gmra.mxu0 %v1411
    %v1485 = vpop.f32.mrf.mxu0
    %v1486 = vadd.f32 0.0, %v1485
    %v1487 = vpop.f32.mrf.mxu0
    %1488 = vmatprep.mubr.f32.mxu0 0.0
    %1489 = vmatmul.mubr.f32.gmra.mxu0 %v1413
    %v1490 = vpop.f32.mrf.mxu0
    %v1491 = vadd.f32 0.0, %v1490
    %v1492 = vpop.f32.mrf.mxu0
    %1493 = vdwg.mxu0
    %v1494 = vsel %vm889, %v1486, -inf
    %1495 = vmax.xlane.f32.xlu0 %v1494
    %v1496 = vpop.xlane.xlu0 %1495
    %v1497 = vsel %vm889, %v1491, -inf
    %1498 = vmax.xlane.f32.xlu0 %v1497
    %v1499 = vpop.xlane.xlu0 %1498
    %v1500 = vsub.f32 %v1486, %v1496
    %v1501 = vsub.f32 %v1491, %v1499
    %v1502 = vmul.f32 %v1500, 1.442695
    %v1503 = vpow.pop %v1502
    %v1504 = vmul.f32 %v1501, 1.442695
    %v1505 = vpow.pop %v1504
    %v1506 = vmul.f32 %v1503, %v74
    %v1507 = vmul.f32 %v1505, %v75
    %v1508 = vsel %vm889, %v1506, 0.0
    %1509 = vadd.xlane.f32.xlu0 %v1508
    %v1510 = vpop.xlane.xlu0 %1509
    %v1511 = vsel %vm889, %v1507, 0.0
    %1512 = vadd.xlane.f32.xlu0 %v1511
    %v1513 = vpop.xlane.xlu0 %1512
    %v1514 = vrcp.pop %v1510
    %v1515 = vrcp.pop %v1513
    %v1516 = vmul.f32 %v1506, %v1514
    %v1517 = vmul.f32 %v1507, %v1515
    %1518 = vrot.lane.b32.xlu0 %v792, 32
    %v1519 = vpop.permute.xlu0 %1518
    %1520 = vrot.lane.b32.xlu0 %v797, 32
    %v1521 = vpop.permute.xlu0 %1520
    %v1525 = vsel %vm889, %v1516, 0
    %v1528 = vsel %vm889, %v1517, 0
    %1530 = vmatprep.subr.mxu0 0.0
    %1531 = vmatpush1.msra.mxu0 0.0
    %1532 = vmatprep.subr.mxu0 0.0
    %1533 = vmatpush1.msra.mxu0 0.0
    %1534 = vmatprep.subr.mxu0 0.0
    %1535 = vmatpush1.msra.mxu0 0.0
    %1536 = vmatprep.subr.mxu0 0.0
    %1537 = vmatpush1.msra.mxu0 0.0
    %1538 = vmatprep.subr.mxu0 0.0
    %1539 = vmatpush1.msra.mxu0 0.0
    %1540 = vmatprep.subr.mxu0 0.0
    %1541 = vmatpush1.msra.mxu0 0.0
    %1542 = vmatprep.subr.mxu0 0.0
    %1543 = vmatpush1.msra.mxu0 0.0
    %1544 = vmatprep.subr.mxu0 0.0
    %1545 = vmatpush1.msra.mxu0 0.0
    %1546 = vmatprep.subr.mxu0 0.0
    %1547 = vmatpush1.msra.mxu0 0.0
    %1548 = vmatprep.subr.mxu0 0.0
    %1549 = vmatpush1.msra.mxu0 0.0
    %1550 = vmatprep.subr.mxu0 0.0
    %1551 = vmatpush1.msra.mxu0 0.0
    %1552 = vmatprep.subr.mxu0 0.0
    %1553 = vmatpush1.msra.mxu0 0.0
    %1554 = vmatprep.subr.mxu0 0.0
    %1555 = vmatpush1.msra.mxu0 0.0
    %1556 = vmatprep.subr.mxu0 0.0
    %1557 = vmatpush1.msra.mxu0 0.0
    %1558 = vmatprep.subr.mxu0 0.0
    %1559 = vmatpush1.msra.mxu0 %v1521
    %1560 = vmatprep.subr.mxu0 0.0
    %1561 = vmatpush1.msra.mxu0 %v1519
    %1562 = vmatprep.subr.mxu0 0.0
    %1563 = vmatpush2.msra.mxu0 0.0
    %1564 = vmatprep.subr.mxu0 0.0
    %1565 = vmatpush2.msra.mxu0 0.0
    %1566 = vmatprep.subr.mxu0 0.0
    %1567 = vmatpush2.msra.mxu0 0.0
    %1568 = vmatprep.subr.mxu0 0.0
    %1569 = vmatpush2.msra.mxu0 0.0
    %1570 = vmatprep.subr.mxu0 0.0
    %1571 = vmatpush2.msra.mxu0 0.0
    %1572 = vmatprep.subr.mxu0 0.0
    %1573 = vmatpush2.msra.mxu0 0.0
    %1574 = vmatprep.subr.mxu0 0.0
    %1575 = vmatpush2.msra.mxu0 0.0
    %1576 = vmatprep.subr.mxu0 0.0
    %1577 = vmatpush2.msra.mxu0 0.0
    %1578 = vmatprep.subr.mxu0 0.0
    %1579 = vmatpush2.msra.mxu0 0.0
    %1580 = vmatprep.subr.mxu0 0.0
    %1581 = vmatpush2.msra.mxu0 0.0
    %1582 = vmatprep.subr.mxu0 0.0
    %1583 = vmatpush2.msra.mxu0 0.0
    %1584 = vmatprep.subr.mxu0 0.0
    %1585 = vmatpush2.msra.mxu0 0.0
    %1586 = vmatprep.subr.mxu0 0.0
    %1587 = vmatpush2.msra.mxu0 0.0
    %1588 = vmatprep.subr.mxu0 0.0
    %1589 = vmatpush2.msra.mxu0 0.0
    %1590 = vmatprep.subr.mxu0 0.0
    %1591 = vmatpush2.msra.mxu0 0.0
    %1592 = vmatprep.subr.mxu0 0.0
    %1593 = vmatpush2.msra.mxu0 0.0
    %1594 = vmatprep.mubr.f32.mxu0 0.0
    %1595 = vmatmul.mubr.f32.gmra.mxu0 %v1525
    %v1596 = vpop.f32.mrf.mxu0
    %v1597 = vadd.f32 0.0, %v1596
    %v1598 = vpop.f32.mrf.mxu0
    %1599 = vmatprep.mubr.f32.mxu0 0.0
    %1600 = vmatmul.mubr.f32.gmra.mxu0 %v1528
    %v1601 = vpop.f32.mrf.mxu0
    %v1602 = vadd.f32 0.0, %v1601
    %v1603 = vpop.f32.mrf.mxu0
    %1604 = vdwg.mxu0
    %v1605 = vadd.f32 %v1401, %v1597
    %v1606 = vadd.f32 %v1402, %v1602
    %v1607 = vlaneseq
    %v1608 = vshrl.u32 %v1607, 7
    %v1609 = vsub.s32 0, %v1608
    %v1610 = vrot.slane %v50, %v1609
    %v1611 = vadd.f32 %v1605, %v1610
    %v1612 = vadd.f32 %v1606, %v1610
    %v1613 = vlaneseq
    %v1614 = vshrl.u32 %v1613, 7
    %v1615 = vsub.s32 0, %v1614
    %v1616 = vrot.slane %v55, %v1615
    %v1618 = vsel %vm183, %v1611, 0
    %v1621 = vsel %vm183, %v1612, 0
    %1623 = vmatprep.subr.mxu0 0.0
    %1624 = vmatpush1.msra.mxu0 0.0
    %1625 = vmatprep.subr.mxu0 0.0
    %1626 = vmatpush1.msra.mxu0 0.0
    %1627 = vmatprep.subr.mxu0 0.0
    %1628 = vmatpush1.msra.mxu0 0.0
    %1629 = vmatprep.subr.mxu0 0.0
    %1630 = vmatpush1.msra.mxu0 0.0
    %1631 = vmatprep.subr.mxu0 0.0
    %1632 = vmatpush1.msra.mxu0 0.0
    %1633 = vmatprep.subr.mxu0 0.0
    %1634 = vmatpush1.msra.mxu0 0.0
    %1635 = vmatprep.subr.mxu0 0.0
    %1636 = vmatpush1.msra.mxu0 0.0
    %1637 = vmatprep.subr.mxu0 0.0
    %1638 = vmatpush1.msra.mxu0 0.0
    %1639 = vmatprep.subr.mxu0 0.0
    %1640 = vmatpush1.msra.mxu0 0.0
    %1641 = vmatprep.subr.mxu0 0.0
    %1642 = vmatpush1.msra.mxu0 0.0
    %1643 = vmatprep.subr.mxu0 0.0
    %1644 = vmatpush1.msra.mxu0 0.0
    %1645 = vmatprep.subr.mxu0 0.0
    %1646 = vmatpush1.msra.mxu0 0.0
    %1647 = vmatprep.subr.mxu0 0.0
    %1648 = vmatpush1.msra.mxu0 %v54
    %1649 = vmatprep.subr.mxu0 0.0
    %1650 = vmatpush1.msra.mxu0 %v53
    %1651 = vmatprep.subr.mxu0 0.0
    %1652 = vmatpush1.msra.mxu0 %v52
    %1653 = vmatprep.subr.mxu0 0.0
    %1654 = vmatpush1.msra.mxu0 %v51
    %1655 = vmatprep.subr.mxu0 0.0
    %1656 = vmatpush2.msra.mxu0 0.0
    %1657 = vmatprep.subr.mxu0 0.0
    %1658 = vmatpush2.msra.mxu0 0.0
    %1659 = vmatprep.subr.mxu0 0.0
    %1660 = vmatpush2.msra.mxu0 0.0
    %1661 = vmatprep.subr.mxu0 0.0
    %1662 = vmatpush2.msra.mxu0 0.0
    %1663 = vmatprep.subr.mxu0 0.0
    %1664 = vmatpush2.msra.mxu0 0.0
    %1665 = vmatprep.subr.mxu0 0.0
    %1666 = vmatpush2.msra.mxu0 0.0
    %1667 = vmatprep.subr.mxu0 0.0
    %1668 = vmatpush2.msra.mxu0 0.0
    %1669 = vmatprep.subr.mxu0 0.0
    %1670 = vmatpush2.msra.mxu0 0.0
    %1671 = vmatprep.subr.mxu0 0.0
    %1672 = vmatpush2.msra.mxu0 0.0
    %1673 = vmatprep.subr.mxu0 0.0
    %1674 = vmatpush2.msra.mxu0 0.0
    %1675 = vmatprep.subr.mxu0 0.0
    %1676 = vmatpush2.msra.mxu0 0.0
    %1677 = vmatprep.subr.mxu0 0.0
    %1678 = vmatpush2.msra.mxu0 0.0
    %1679 = vmatprep.subr.mxu0 0.0
    %1680 = vmatpush2.msra.mxu0 0.0
    %1681 = vmatprep.subr.mxu0 0.0
    %1682 = vmatpush2.msra.mxu0 0.0
    %1683 = vmatprep.subr.mxu0 0.0
    %1684 = vmatpush2.msra.mxu0 0.0
    %1685 = vmatprep.subr.mxu0 0.0
    %1686 = vmatpush2.msra.mxu0 0.0
    %1687 = vmatprep.mubr.f32.mxu0 0.0
    %1688 = vmatmul.mubr.f32.gmra.mxu0 %v1618
    %v1689 = vpop.f32.mrf.mxu0
    %v1690 = vadd.f32 %v1616, %v1689
    %v1691 = vpop.f32.mrf.mxu0
    %1692 = vmatprep.mubr.f32.mxu0 0.0
    %1693 = vmatmul.mubr.f32.gmra.mxu0 %v1621
    %v1694 = vpop.f32.mrf.mxu0
    %v1695 = vadd.f32 %v1616, %v1694
    %v1696 = vpop.f32.mrf.mxu0
    %1697 = vdwg.mxu0
    %v1698 = vtanh.pop %v1690
    %v1699 = vtanh.pop %v1695
    %v1700 = vadd.f32 %v632, %v1698
    %v1701 = vadd.f32 %v637, %v1699
    %v1702 = vsel %vm183, %v1700, 0.0
    %1703 = vadd.xlane.f32.xlu0 %v1702
    %v1704 = vpop.xlane.xlu0 %1703
    %v1705 = vsel %vm183, %v1701, 0.0
    %1706 = vadd.xlane.f32.xlu0 %v1705
    %v1707 = vpop.xlane.xlu0 %1706
    %v1708 = vmul.f32 %v1704, %v161
    %v1709 = vmul.f32 %v1707, %v161
    %v1710 = vsub.f32 %v1700, %v1708
    %v1711 = vsub.f32 %v1701, %v1709
    %v1712 = vmul.f32 %v1710, %v1710
    %v1713 = vmul.f32 %v1711, %v1711
    %v1714 = vsel %vm183, %v1712, 0.0
    %1715 = vadd.xlane.f32.xlu0 %v1714
    %v1716 = vpop.xlane.xlu0 %1715
    %v1717 = vsel %vm183, %v1713, 0.0
    %1718 = vadd.xlane.f32.xlu0 %v1717
    %v1719 = vpop.xlane.xlu0 %1718
    %v1720 = vmul.f32 %v1716, %v161
    %v1721 = vmul.f32 %v1719, %v161
    %v1722 = vadd.f32 %v1720, 1e-05
    %v1723 = vadd.f32 %v1721, 1e-05
    %v1724 = vrsqrt.pop %v1722
    %v1725 = vrsqrt.pop %v1723
    %v1726 = vmul.f32 %v1710, %v1724
    %v1727 = vmul.f32 %v1711, %v1725
    %v1728 = vlaneseq
    %v1729 = vshrl.u32 %v1728, 7
    %v1730 = vsub.s32 0, %v1729
    %v1731 = vrot.slane %v56, %v1730
    %v1732 = vmul.f32 %v1726, %v1731
    %v1733 = vmul.f32 %v1727, %v1731
    %v1734 = vlaneseq
    %v1735 = vshrl.u32 %v1734, 7
    %v1736 = vsub.s32 0, %v1735
    %v1737 = vrot.slane %v57, %v1736
    %v1738 = vadd.f32 %v1732, %v1737
    %v1739 = vadd.f32 %v1733, %v1737
    %v1741 = vsel %vm889, %v73, 0
    %1743 = vmatprep.subr.mxu0 0.0
    %1744 = vmatpush1.msra.mxu0 0.0
    %1745 = vmatprep.subr.mxu0 0.0
    %1746 = vmatpush1.msra.mxu0 0.0
    %1747 = vmatprep.subr.mxu0 0.0
    %1748 = vmatpush1.msra.mxu0 0.0
    %1749 = vmatprep.subr.mxu0 0.0
    %1750 = vmatpush1.msra.mxu0 0.0
    %1751 = vmatprep.subr.mxu0 0.0
    %1752 = vmatpush1.msra.mxu0 0.0
    %1753 = vmatprep.subr.mxu0 0.0
    %1754 = vmatpush1.msra.mxu0 0.0
    %1755 = vmatprep.subr.mxu0 0.0
    %1756 = vmatpush1.msra.mxu0 0.0
    %1757 = vmatprep.subr.mxu0 0.0
    %1758 = vmatpush1.msra.mxu0 0.0
    %1759 = vmatprep.subr.mxu0 0.0
    %1760 = vmatpush1.msra.mxu0 0.0
    %1761 = vmatprep.subr.mxu0 0.0
    %1762 = vmatpush1.msra.mxu0 0.0
    %1763 = vmatprep.subr.mxu0 0.0
    %1764 = vmatpush1.msra.mxu0 0.0
    %1765 = vmatprep.subr.mxu0 0.0
    %1766 = vmatpush1.msra.mxu0 0.0
    %1767 = vmatprep.subr.mxu0 0.0
    %1768 = vmatpush1.msra.mxu0 0.0
    %1769 = vmatprep.subr.mxu0 0.0
    %1770 = vmatpush1.msra.mxu0 0.0
    %1771 = vmatprep.subr.mxu0 0.0
    %1772 = vmatpush1.msra.mxu0 %v1739
    %1773 = vmatprep.subr.mxu0 0.0
    %1774 = vmatpush1.msra.mxu0 %v1738
    %1775 = vmatprep.subr.mxu0 0.0
    %1776 = vmatpush2.msra.mxu0 0.0
    %1777 = vmatprep.subr.mxu0 0.0
    %1778 = vmatpush2.msra.mxu0 0.0
    %1779 = vmatprep.subr.mxu0 0.0
    %1780 = vmatpush2.msra.mxu0 0.0
    %1781 = vmatprep.subr.mxu0 0.0
    %1782 = vmatpush2.msra.mxu0 0.0
    %1783 = vmatprep.subr.mxu0 0.0
    %1784 = vmatpush2.msra.mxu0 0.0
    %1785 = vmatprep.subr.mxu0 0.0
    %1786 = vmatpush2.msra.mxu0 0.0
    %1787 = vmatprep.subr.mxu0 0.0
    %1788 = vmatpush2.msra.mxu0 0.0
    %1789 = vmatprep.subr.mxu0 0.0
    %1790 = vmatpush2.msra.mxu0 0.0
    %1791 = vmatprep.subr.mxu0 0.0
    %1792 = vmatpush2.msra.mxu0 0.0
    %1793 = vmatprep.subr.mxu0 0.0
    %1794 = vmatpush2.msra.mxu0 0.0
    %1795 = vmatprep.subr.mxu0 0.0
    %1796 = vmatpush2.msra.mxu0 0.0
    %1797 = vmatprep.subr.mxu0 0.0
    %1798 = vmatpush2.msra.mxu0 0.0
    %1799 = vmatprep.subr.mxu0 0.0
    %1800 = vmatpush2.msra.mxu0 0.0
    %1801 = vmatprep.subr.mxu0 0.0
    %1802 = vmatpush2.msra.mxu0 0.0
    %1803 = vmatprep.subr.mxu0 0.0
    %1804 = vmatpush2.msra.mxu0 0.0
    %1805 = vmatprep.subr.mxu0 0.0
    %1806 = vmatpush2.msra.mxu0 0.0
    %1807 = vmatprep.mubr.f32.mxu0 0.0
    %1808 = vmatmul.mubr.f32.gmra.mxu0 %v1741
    %v1809 = vpop.f32.mrf.mxu0
    %v1810 = vadd.f32 0.0, %v1809
    %v1811 = vpop.f32.mrf.mxu0
    %1812 = vdwg.mxu0
    %v1814 = vsel %vm183, %v1810, 0
    %1816 = vmatprep.subr.mxu0 0.0
    %1817 = vmatpush1.msra.mxu0 0.0
    %1818 = vmatprep.subr.mxu0 0.0
    %1819 = vmatpush1.msra.mxu0 0.0
    %1820 = vmatprep.subr.mxu0 0.0
    %1821 = vmatpush1.msra.mxu0 0.0
    %1822 = vmatprep.subr.mxu0 0.0
    %1823 = vmatpush1.msra.mxu0 0.0
    %1824 = vmatprep.subr.mxu0 0.0
    %1825 = vmatpush1.msra.mxu0 0.0
    %1826 = vmatprep.subr.mxu0 0.0
    %1827 = vmatpush1.msra.mxu0 0.0
    %1828 = vmatprep.subr.mxu0 0.0
    %1829 = vmatpush1.msra.mxu0 0.0
    %1830 = vmatprep.subr.mxu0 0.0
    %1831 = vmatpush1.msra.mxu0 0.0
    %1832 = vmatprep.subr.mxu0 0.0
    %1833 = vmatpush1.msra.mxu0 0.0
    %1834 = vmatprep.subr.mxu0 0.0
    %1835 = vmatpush1.msra.mxu0 0.0
    %1836 = vmatprep.subr.mxu0 0.0
    %1837 = vmatpush1.msra.mxu0 0.0
    %1838 = vmatprep.subr.mxu0 0.0
    %1839 = vmatpush1.msra.mxu0 0.0
    %1840 = vmatprep.subr.mxu0 0.0
    %1841 = vmatpush1.msra.mxu0 %v65
    %1842 = vmatprep.subr.mxu0 0.0
    %1843 = vmatpush1.msra.mxu0 %v64
    %1844 = vmatprep.subr.mxu0 0.0
    %1845 = vmatpush1.msra.mxu0 %v63
    %1846 = vmatprep.subr.mxu0 0.0
    %1847 = vmatpush1.msra.mxu0 %v62
    %1848 = vmatprep.subr.mxu0 0.0
    %1849 = vmatpush2.msra.mxu0 0.0
    %1850 = vmatprep.subr.mxu0 0.0
    %1851 = vmatpush2.msra.mxu0 0.0
    %1852 = vmatprep.subr.mxu0 0.0
    %1853 = vmatpush2.msra.mxu0 0.0
    %1854 = vmatprep.subr.mxu0 0.0
    %1855 = vmatpush2.msra.mxu0 0.0
    %1856 = vmatprep.subr.mxu0 0.0
    %1857 = vmatpush2.msra.mxu0 0.0
    %1858 = vmatprep.subr.mxu0 0.0
    %1859 = vmatpush2.msra.mxu0 0.0
    %1860 = vmatprep.subr.mxu0 0.0
    %1861 = vmatpush2.msra.mxu0 0.0
    %1862 = vmatprep.subr.mxu0 0.0
    %1863 = vmatpush2.msra.mxu0 0.0
    %1864 = vmatprep.subr.mxu0 0.0
    %1865 = vmatpush2.msra.mxu0 0.0
    %1866 = vmatprep.subr.mxu0 0.0
    %1867 = vmatpush2.msra.mxu0 0.0
    %1868 = vmatprep.subr.mxu0 0.0
    %1869 = vmatpush2.msra.mxu0 0.0
    %1870 = vmatprep.subr.mxu0 0.0
    %1871 = vmatpush2.msra.mxu0 0.0
    %1872 = vmatprep.subr.mxu0 0.0
    %1873 = vmatpush2.msra.mxu0 0.0
    %1874 = vmatprep.subr.mxu0 0.0
    %1875 = vmatpush2.msra.mxu0 0.0
    %1876 = vmatprep.subr.mxu0 0.0
    %1877 = vmatpush2.msra.mxu0 0.0
    %1878 = vmatprep.subr.mxu0 0.0
    %1879 = vmatpush2.msra.mxu0 0.0
    %1880 = vmatprep.mubr.f32.mxu0 0.0
    %1881 = vmatmul.mubr.f32.gmra.mxu0 %v1814
    %v1882 = vpop.f32.mrf.mxu0
    %v1883 = vadd.f32 0.0, %v1882
    %v1884 = vpop.f32.mrf.mxu0
    %1885 = vdwg.mxu0
    %1886 = vmatprep.subr.mxu0 0.0
    %1887 = vmatpush1.msra.mxu0 0.0
    %1888 = vmatprep.subr.mxu0 0.0
    %1889 = vmatpush1.msra.mxu0 0.0
    %1890 = vmatprep.subr.mxu0 0.0
    %1891 = vmatpush1.msra.mxu0 0.0
    %1892 = vmatprep.subr.mxu0 0.0
    %1893 = vmatpush1.msra.mxu0 0.0
    %1894 = vmatprep.subr.mxu0 0.0
    %1895 = vmatpush1.msra.mxu0 0.0
    %1896 = vmatprep.subr.mxu0 0.0
    %1897 = vmatpush1.msra.mxu0 0.0
    %1898 = vmatprep.subr.mxu0 0.0
    %1899 = vmatpush1.msra.mxu0 0.0
    %1900 = vmatprep.subr.mxu0 0.0
    %1901 = vmatpush1.msra.mxu0 0.0
    %1902 = vmatprep.subr.mxu0 0.0
    %1903 = vmatpush1.msra.mxu0 0.0
    %1904 = vmatprep.subr.mxu0 0.0
    %1905 = vmatpush1.msra.mxu0 0.0
    %1906 = vmatprep.subr.mxu0 0.0
    %1907 = vmatpush1.msra.mxu0 0.0
    %1908 = vmatprep.subr.mxu0 0.0
    %1909 = vmatpush1.msra.mxu0 0.0
    %1910 = vmatprep.subr.mxu0 0.0
    %1911 = vmatpush1.msra.mxu0 %v61
    %1912 = vmatprep.subr.mxu0 0.0
    %1913 = vmatpush1.msra.mxu0 %v60
    %1914 = vmatprep.subr.mxu0 0.0
    %1915 = vmatpush1.msra.mxu0 %v59
    %1916 = vmatprep.subr.mxu0 0.0
    %1917 = vmatpush1.msra.mxu0 %v58
    %1918 = vmatprep.subr.mxu0 0.0
    %1919 = vmatpush2.msra.mxu0 0.0
    %1920 = vmatprep.subr.mxu0 0.0
    %1921 = vmatpush2.msra.mxu0 0.0
    %1922 = vmatprep.subr.mxu0 0.0
    %1923 = vmatpush2.msra.mxu0 0.0
    %1924 = vmatprep.subr.mxu0 0.0
    %1925 = vmatpush2.msra.mxu0 0.0
    %1926 = vmatprep.subr.mxu0 0.0
    %1927 = vmatpush2.msra.mxu0 0.0
    %1928 = vmatprep.subr.mxu0 0.0
    %1929 = vmatpush2.msra.mxu0 0.0
    %1930 = vmatprep.subr.mxu0 0.0
    %1931 = vmatpush2.msra.mxu0 0.0
    %1932 = vmatprep.subr.mxu0 0.0
    %1933 = vmatpush2.msra.mxu0 0.0
    %1934 = vmatprep.subr.mxu0 0.0
    %1935 = vmatpush2.msra.mxu0 0.0
    %1936 = vmatprep.subr.mxu0 0.0
    %1937 = vmatpush2.msra.mxu0 0.0
    %1938 = vmatprep.subr.mxu0 0.0
    %1939 = vmatpush2.msra.mxu0 0.0
    %1940 = vmatprep.subr.mxu0 0.0
    %1941 = vmatpush2.msra.mxu0 0.0
    %1942 = vmatprep.subr.mxu0 0.0
    %1943 = vmatpush2.msra.mxu0 0.0
    %1944 = vmatprep.subr.mxu0 0.0
    %1945 = vmatpush2.msra.mxu0 0.0
    %1946 = vmatprep.subr.mxu0 0.0
    %1947 = vmatpush2.msra.mxu0 0.0
    %1948 = vmatprep.subr.mxu0 0.0
    %1949 = vmatpush2.msra.mxu0 0.0
    %1950 = vmatprep.mubr.f32.mxu0 0.0
    %1951 = vmatmul.mubr.f32.gmra.mxu0 %v185
    %v1952 = vpop.f32.mrf.mxu0
    %v1953 = vadd.f32 %v1883, %v1952
    %v1954 = vpop.f32.mrf.mxu0
    %1955 = vdwg.mxu0
    %v1956 = vlaneseq
    %v1957 = vshrl.u32 %v1956, 7
    %v1958 = vsub.s32 0, %v1957
    %v1959 = vrot.slane %v66, %v1958
    %v1960 = vadd.f32 %v1953, %v1959
    %v1961 = vtanh.pop %v1960
    %1962 = vst [vmem:[#allocation5] sm:$0x3] %v1961
    // Predicated region
    $region18: #{tpu_custom_call.1} parent=1 // pred_check
      _
    $region19: #{tpu_custom_call.1} parent=1 // pred_check_branch
      %1964 = sbr.rel (0) target = $region21
    $region20: #{tpu_custom_call.1} parent=1 // pred_region
      %s1966 = ssub.s32 32, 32
      %1967 = vsyncadd [#allocation4], %s1966
      %s1969 = sshll.u32 [#allocation5], 4
      %s1970 = int_to_ptr.vmem [resolvable:$true] %s1969
      %1972 = dma.vmem_to_hbm [thread:$0]  %s1970, 32, %s3, [#allocation4]
    $region21: #{tpu_custom_call.1} parent=1 // pred_fallthru
      _
    // Predicated region
    $region22: #{tpu_custom_call.1} parent=1 // pred_check
      _
    $region23: #{tpu_custom_call.1} parent=1 // pred_check_branch
      %1974 = sbr.rel (0) target = $region25
    $region24: #{tpu_custom_call.1} parent=1 // pred_region
      %1975 = dma.done [#allocation4], 32
    $region25: #{tpu_custom_call.1} parent=1 // pred_fallthru
      _
    %1976 = vsyncpa [#allocation3], 1
    %1977 = vsyncpa [#allocation4], 1

</llo_original>
